<compile_context>
chip_gen: v7x
topology: tpu7x:2x2x1
jax: 0.10.0
libtpu: 0.0.40
codegen_flags: <defaults>
</compile_context>

<pallas_src>
import math

import jax
import jax.numpy as jnp
from jax.experimental import pallas as pl
from jax.experimental.pallas import tpu as pltpu

# ---------------- config (small, consistent with the module's __init__) --------
CONFIG = dict(
    hidden_dim=32,
    num_heads=4,
    dropout_rate=0.0,       # declared but never applied in forward
    train_img_size=8,
    eval_img_size=8,
    patch_size=2,
    num_t=2,
)


# ---------------- RoPE precompute (host side) -----------------------------------
def precompute_freqs_cis_1d(dim, end, x_factor=1.0, base=10000.0):
    freqs = 1.0 / (base ** (jnp.arange(0, dim, 2)[: dim // 2].astype(jnp.float32) / dim))
    t = jnp.arange(end, dtype=jnp.float32) / x_factor
    freqs = jnp.outer(t, freqs)
    return jnp.exp(1j * freqs)            # complex64, (end, dim//2)


# ---------------- host-side one-time parameter prep ------------------------------
def prepare_fused_params(W_w, W_b, Wo_w, Wo_b, freqs_spatial, freqs_temporal,
                         B, L, num_heads):
    """Pre-permute / pre-fold everything the fused kernel needs (done ONCE)."""
    threeD, D = W_w.shape
    nh = num_heads
    hd = D // nh
    hh = hd // 2                       # rotary pairs per head
    rows = B * nh * L
    H = D // 2

    # --- qkv output-column permutation: [q_re | q_im | k_re | k_im | v] ----------
    # Original layout: head h owns columns [h*3*hd, (h+1)*3*hd) as [q(hd)|k(hd)|v(hd)],
    # q/k dims interleaved as complex pairs (2j, 2j+1).
    perm = []
    for half in (0, 1):                                    # q: real half, then imag half
        for h in range(nh):
            for j in range(hh):
                perm.append(h * 3 * hd + 2 * j + half)
    for half in (0, 1):                                    # k: real half, then imag half
        for h in range(nh):
            for j in range(hh):
                perm.append(h * 3 * hd + hd + 2 * j + half)
    for h in range(nh):                                    # v: contiguous original order
        for j in range(hd):
            perm.append(h * 3 * hd + 2 * hd + j)
    perm = jnp.asarray(perm, dtype=jnp.int32)

    wqkv_p = jnp.asarray(W_w.T)[:, perm]                   # (D, 3D), pre-transposed + permuted
    bqkv_p = W_b[perm].reshape(1, 3 * D)
    wo_t = jnp.asarray(Wo_w.T)                             # (D, D)
    bo = Wo_b.reshape(1, D)

    # --- combined spatial*temporal RoPE tables (rotations commute) ----------------
    comb = (freqs_temporal[:, None, :] * freqs_spatial[None, :, :]).reshape(-1, hh)  # (L, hh)
    cos1 = jnp.real(comb).astype(jnp.float32)
    sin1 = jnp.imag(comb).astype(jnp.float32)
    # replicate to (b, h, l)-row layout and the head-major half-column layout (rows, D//2)
    cosR = jnp.tile(cos1, (B * nh, nh))
    sinR = jnp.tile(sin1, (B * nh, nh))

    r_idx = jnp.arange(rows)
    b_of = r_idx // (nh * L)
    h_of = (r_idx // L) % nh
    l_of = r_idx % L

    # fold 1/sqrt(hd) into the Q tables (cheaper than a per-score multiply)
    inv_sqrt_hd = 1.0 / math.sqrt(hd)
    cosQ = cosR * inv_sqrt_hd
    sinQ = sinR * inv_sqrt_hd
    # fold the per-head column selection of K into the K tables (only one of Q/K needs it)
    half_col_head = jnp.arange(H) // hh
    mskk_h = (half_col_head[None, :] == h_of[:, None]).astype(jnp.float32)        # (rows, H)
    cosK = cosR * mskk_h
    sinK = sinR * mskk_h

    # V head-column mask (original contiguous per-head layout -> output column placement)
    col_head = jnp.arange(D) // hd
    mskv = (col_head[None, :] == h_of[:, None]).astype(jnp.float32)               # (rows, D)

    # replication (b, l) -> (b, h, l) rows, and its transpose (head-sum back to (b, l))
    R = jnp.zeros((rows, B * L), jnp.float32).at[r_idx, b_of * L + l_of].set(1.0)
    Rt = R.T

    # additive attention mask: valid iff same batch, same head, and key_pos <= query_pos
    valid = ((b_of[:, None] == b_of[None, :]) &
             (h_of[:, None] == h_of[None, :]) &
             (l_of[None, :] <= l_of[:, None]))
    bias = jnp.where(valid, 0.0, -1e30).astype(jnp.float32)                        # (rows, rows)

    return (wqkv_p, bqkv_p, wo_t, bo, cosQ, sinQ, cosK, sinK, R, Rt, mskv, bias)


# ---------------- fused Pallas kernel --------------------------------------------
def _fused_mha_kernel(x_ref, wqkv_ref, bqkv_ref, wo_ref, bo_ref,
                      cosq_ref, sinq_ref, cosk_ref, sink_ref,
                      r_ref, rt_ref, mskv_ref, bias_ref, o_ref):
    D = x_ref.shape[-1]
    H = D // 2

    # QKV projection: one (B*L, D) @ (D, 3D) push; result stays a value (no VMEM scratch).
    qkv = (jnp.dot(x_ref[...], wqkv_ref[...], preferred_element_type=jnp.float32)
           + bqkv_ref[...])

    # Replicate token rows into the (batch, head, token) row layout: one tiny push.
    rep = jnp.dot(r_ref[...], qkv, preferred_element_type=jnp.float32)            # (rows, 3D)

    q_re, q_im = rep[:, 0:H], rep[:, H:D]
    k_re, k_im = rep[:, D:D + H], rep[:, D + H:2 * D]
    v_sel = rep[:, 2 * D:3 * D] * mskv_ref[...]                                   # (rows, D)

    # RoPE in rotate_half layout; 1/sqrt(hd) is folded into the Q tables and the
    # per-head key column selection into the K tables (all host constants).
    cq, sq = cosq_ref[...], sinq_ref[...]
    ck, sk = cosk_ref[...], sink_ref[...]
    q1 = q_re * cq - q_im * sq
    q2 = q_im * cq + q_re * sq
    k1 = k_re * ck - k_im * sk
    k2 = k_im * ck + k_re * sk

    # Block-diagonal (batch x head) causal attention: all heads / batches in one shot.
    dn = (((1,), (1,)), ((), ()))                                                  # A @ B^T
    s = (jax.lax.dot_general(q1, k1, dn, preferred_element_type=jnp.float32)
         + jax.lax.dot_general(q2, k2, dn, preferred_element_type=jnp.float32)
         + bias_ref[...])                                                          # (rows, rows)

    # stable fp32 softmax; masked entries underflow to exactly 0 after the max-sub
    m = jnp.max(s, axis=-1, keepdims=True)
    p = jnp.exp(s - m)
    denom = jnp.sum(p, axis=-1, keepdims=True)

    o_h = jnp.dot(p, v_sel, preferred_element_type=jnp.float32)                    # (rows, D)
    # normalize the small (rows, D) output instead of the (rows, rows) probabilities;
    # EUP approx reciprocal sits in its own VLIW slot (near free).
    o_h = o_h * pl.reciprocal(denom, approx=True)

    # Head-sum back to the (b, l) row layout == lane-concatenation of the heads.
    o_wide = jnp.dot(rt_ref[...], o_h, preferred_element_type=jnp.float32)         # (B*L, D)

    a = o_wide * jax.nn.sigmoid(o_wide)                                            # swish
    o_ref[...] = (jnp.dot(a, wo_ref[...], preferred_element_type=jnp.float32)
                  + bo_ref[...]).astype(o_ref.dtype)                               # single store


def mha_forward_pallas(x, params):
    """Fused forward. `params` comes from prepare_fused_params (host-side, one time)."""
    (wqkv_p, bqkv_p, wo_t, bo, cosQ, sinQ, cosK, sinK, R, Rt, mskv, bias) = params
    B, L, D = x.shape
    M = B * L
    x2 = x.reshape(M, D)

    args = (x2, wqkv_p, bqkv_p, wo_t, bo, cosQ, sinQ, cosK, sinK, R, Rt, mskv, bias)
    full2 = lambda i: (0, 0)
    out = pl.pallas_call(
        _fused_mha_kernel,
        out_shape=jax.ShapeDtypeStruct((M, D), jnp.float32),
        grid=(1,),                       # single step: whole problem is VMEM/vreg resident
        in_specs=[pl.BlockSpec(a.shape, full2) for a in args],
        out_specs=pl.BlockSpec((M, D), full2),
        compiler_params=pltpu.CompilerParams(dimension_semantics=("arbitrary",)),
    )(*args)
    return out.reshape(B, L, D)


# ---------------- plain-JAX reference (mirrors the PyTorch forward) ---------------
def apply_rotary_emb(xq, xk, freqs_cis):
    """xq/xk: (..., L, h); freqs_cis: (L, h//2) complex (interleaved pairs)."""
    def rot(x):
        xr = x.reshape(x.shape[:-1] + (-1, 2))
        xc = jax.lax.complex(xr[..., 0], xr[..., 1])
        fc = freqs_cis.reshape((1,) * (xc.ndim - 2) + freqs_cis.shape)
        out = xc * fc
        return jnp.stack([jnp.real(out), jnp.imag(out)], axis=-1).reshape(x.shape)
    return rot(xq), rot(xk)


def mha_forward_ref(x, W_w, W_b, Wo_w, Wo_b, freqs_spatial, freqs_temporal, num_heads, num_t):
    B, L, D = x.shape
    nh, nt = num_heads, num_t
    hd = D // nh
    qkv = x.reshape(B * L, D) @ W_w.T + W_b
    # 'b l (n h) -> (b n) l h' then chunk(3, -1)
    qkv = qkv.reshape(B, L, nh, 3 * hd).transpose(0, 2, 1, 3).reshape(B * nh, L, 3 * hd)
    q, k, v = qkv[..., :hd], qkv[..., hd:2 * hd], qkv[..., 2 * hd:]

    Ls = L // nt
    qs = q.reshape(B * nh, nt, Ls, hd)
    ks = k.reshape(B * nh, nt, Ls, hd)
    qs, ks = apply_rotary_emb(qs, ks, freqs_spatial)          # spatial RoPE over l
    qt = jnp.transpose(qs, (0, 2, 1, 3))
    kt = jnp.transpose(ks, (0, 2, 1, 3))
    qt, kt = apply_rotary_emb(qt, kt, freqs_temporal)         # temporal RoPE over t
    q = jnp.transpose(qt, (0, 2, 1, 3)).reshape(B * nh, L, hd)
    k = jnp.transpose(kt, (0, 2, 1, 3)).reshape(B * nh, L, hd)

    scale = 1.0 / math.sqrt(hd)
    s = jnp.einsum("blh,bmh->blm", q, k) * scale
    row = jnp.arange(L)[:, None]
    col = jnp.arange(L)[None, :]
    s = jnp.where(col <= row, s, -1e30)                       # causal mask
    p = jax.nn.softmax(s, axis=-1)
    o = jnp.einsum("blm,bmh->blh", p, v)

    o = o.reshape(B, nh, L, hd).transpose(0, 2, 1, 3).reshape(B * L, D)
    a = o * jax.nn.sigmoid(o)                                 # swish
    out = a @ Wo_w.T + Wo_b
    return out.reshape(B, L, D)


# ---------------- main ------------------------------------------------------------
if __name__ == "__main__":
    cfg = CONFIG
    D = cfg["hidden_dim"]
    nh = cfg["num_heads"]
    hd = D // nh
    nt = cfg["num_t"]
    L1d_eval = cfg["eval_img_size"] // cfg["patch_size"]      # = 4
    L = L1d_eval * nt                                         # eval-mode 1D-spatial path -> 8
    B = 2

    key = jax.random.PRNGKey(0)
    kx, kw1, kb1, kw2, kb2 = jax.random.split(key, 5)

    # deterministic param init (PyTorch Linear default: U(-1/sqrt(fan_in), 1/sqrt(fan_in)))
    bound = 1.0 / math.sqrt(D)
    W_w = jax.random.uniform(kw1, (3 * D, D), jnp.float32, -bound, bound)
    W_b = jax.random.uniform(kb1, (3 * D,), jnp.float32, -bound, bound)
    Wo_w = jax.random.uniform(kw2, (D, D), jnp.float32, -bound, bound)
    Wo_b = jax.random.uniform(kb2, (D,), jnp.float32, -bound, bound)

    freqs_spatial = precompute_freqs_cis_1d(hd, L1d_eval)     # freqs_cis_spatial_1d_eval
    freqs_temporal = precompute_freqs_cis_1d(hd, nt)          # freqs_cis_temporal

    x = jax.random.normal(kx, (B, L, D), jnp.float32)

    # One-time host-side prep: permuted/pre-transposed weights, scale/mask-folded RoPE
    # tables, replication matrices and the causal+block-diagonal attention mask.
    params = prepare_fused_params(W_w, W_b, Wo_w, Wo_b, freqs_spatial, freqs_temporal,
                                  B, L, nh)

    out = mha_forward_pallas(x, params)
    out = jax.block_until_ready(out)

    ref = mha_forward_ref(x, W_w, W_b, Wo_w, Wo_b, freqs_spatial, freqs_temporal, nh, nt)
    ref = jax.block_until_ready(ref)

    assert out.shape == (B, L, D)
    err = float(jnp.max(jnp.abs(out - ref)))
    # pl.reciprocal(approx=True) is the only deliberately sub-f32-exact step
    # (~1e-4 relative), hence the 2e-3 tolerance instead of 1e-4.
    assert jnp.allclose(out, ref, atol=2e-3, rtol=2e-3), err
    print("KERNEL_OK")
</pallas_src>

<mosaic_0001>
module attributes {stable_mosaic.version = 11 : i64} {
  func.func @_fused_mha_kernel(%arg0: i32, %arg1: memref<16x32xf32, #tpu.memory_space<vmem>>, %arg2: memref<32x96xf32, #tpu.memory_space<vmem>>, %arg3: memref<1x96xf32, #tpu.memory_space<vmem>>, %arg4: memref<32x32xf32, #tpu.memory_space<vmem>>, %arg5: memref<1x32xf32, #tpu.memory_space<vmem>>, %arg6: memref<64x16xf32, #tpu.memory_space<vmem>>, %arg7: memref<64x16xf32, #tpu.memory_space<vmem>>, %arg8: memref<64x16xf32, #tpu.memory_space<vmem>>, %arg9: memref<64x16xf32, #tpu.memory_space<vmem>>, %arg10: memref<64x16xf32, #tpu.memory_space<vmem>>, %arg11: memref<16x64xf32, #tpu.memory_space<vmem>>, %arg12: memref<64x32xf32, #tpu.memory_space<vmem>>, %arg13: memref<64x64xf32, #tpu.memory_space<vmem>>, %arg14: memref<16x32xf32, #tpu.memory_space<vmem>>) attributes {dimension_semantics = [#tpu.dimension_semantics<arbitrary>], iteration_bounds = array<i64: 1>, scalar_prefetch = 0 : i64, scratch_operands = 0 : i64, tpu.core_type = #tpu.core_type<tc>, window_params = [{pipeline_mode = #tpu.pipeline_mode<synchronous>, transform_indices = @transform_0, window_bounds = array<i64: 16, 32>}, {pipeline_mode = #tpu.pipeline_mode<synchronous>, transform_indices = @transform_1, window_bounds = array<i64: 32, 96>}, {pipeline_mode = #tpu.pipeline_mode<synchronous>, transform_indices = @transform_2, window_bounds = array<i64: 1, 96>}, {pipeline_mode = #tpu.pipeline_mode<synchronous>, transform_indices = @transform_3, window_bounds = array<i64: 32, 32>}, {pipeline_mode = #tpu.pipeline_mode<synchronous>, transform_indices = @transform_4, window_bounds = array<i64: 1, 32>}, {pipeline_mode = #tpu.pipeline_mode<synchronous>, transform_indices = @transform_5, window_bounds = array<i64: 64, 16>}, {pipeline_mode = #tpu.pipeline_mode<synchronous>, transform_indices = @transform_6, window_bounds = array<i64: 64, 16>}, {pipeline_mode = #tpu.pipeline_mode<synchronous>, transform_indices = @transform_7, window_bounds = array<i64: 64, 16>}, {pipeline_mode = #tpu.pipeline_mode<synchronous>, transform_indices = @transform_8, window_bounds = array<i64: 64, 16>}, {pipeline_mode = #tpu.pipeline_mode<synchronous>, transform_indices = @transform_9, window_bounds = array<i64: 64, 16>}, {pipeline_mode = #tpu.pipeline_mode<synchronous>, transform_indices = @transform_10, window_bounds = array<i64: 16, 64>}, {pipeline_mode = #tpu.pipeline_mode<synchronous>, transform_indices = @transform_11, window_bounds = array<i64: 64, 32>}, {pipeline_mode = #tpu.pipeline_mode<synchronous>, transform_indices = @transform_12, window_bounds = array<i64: 64, 64>}, {pipeline_mode = #tpu.pipeline_mode<synchronous>, transform_indices = @transform_13, window_bounds = array<i64: 16, 32>}]} {
    %c0 = arith.constant 0 : index
    %c0_0 = arith.constant 0 : index
    %0 = vector.load %arg1[%c0, %c0_0] : memref<16x32xf32, #tpu.memory_space<vmem>>, vector<16x32xf32>
    %c0_1 = arith.constant 0 : index
    %c0_2 = arith.constant 0 : index
    %1 = vector.load %arg2[%c0_1, %c0_2] : memref<32x96xf32, #tpu.memory_space<vmem>>, vector<32x96xf32>
    %cst = arith.constant dense<0.000000e+00> : vector<16x96xf32>
    %2 = tpu.matmul %0, %1, %cst {dimension_numbers = #tpu.dot_dimension_numbers<[1], [0], [0], [1], [0, 0, 1, 1], [], []>} : vector<16x32xf32>, vector<32x96xf32>, vector<16x96xf32> -> vector<16x96xf32>
    %c0_3 = arith.constant 0 : index
    %c0_4 = arith.constant 0 : index
    %3 = vector.load %arg3[%c0_3, %c0_4] : memref<1x96xf32, #tpu.memory_space<vmem>>, vector<1x96xf32>
    %4 = vector.broadcast %3 : vector<1x96xf32> to vector<16x96xf32>
    %5 = arith.addf %2, %4 : vector<16x96xf32>
    %c0_5 = arith.constant 0 : index
    %c0_6 = arith.constant 0 : index
    %6 = vector.load %arg10[%c0_5, %c0_6] : memref<64x16xf32, #tpu.memory_space<vmem>>, vector<64x16xf32>
    %cst_7 = arith.constant dense<0.000000e+00> : vector<64x96xf32>
    %7 = tpu.matmul %6, %5, %cst_7 {dimension_numbers = #tpu.dot_dimension_numbers<[1], [0], [0], [1], [0, 0, 1, 1], [], []>} : vector<64x16xf32>, vector<16x96xf32>, vector<64x96xf32> -> vector<64x96xf32>
    %8 = vector.extract_strided_slice %7 {offsets = [0, 0], sizes = [64, 16], strides = [1, 1]} : vector<64x96xf32> to vector<64x16xf32>
    %9 = vector.extract_strided_slice %7 {offsets = [0, 16], sizes = [64, 16], strides = [1, 1]} : vector<64x96xf32> to vector<64x16xf32>
    %10 = vector.extract_strided_slice %7 {offsets = [0, 32], sizes = [64, 16], strides = [1, 1]} : vector<64x96xf32> to vector<64x16xf32>
    %11 = vector.extract_strided_slice %7 {offsets = [0, 48], sizes = [64, 16], strides = [1, 1]} : vector<64x96xf32> to vector<64x16xf32>
    %12 = vector.extract_strided_slice %7 {offsets = [0, 64], sizes = [64, 32], strides = [1, 1]} : vector<64x96xf32> to vector<64x32xf32>
    %c0_8 = arith.constant 0 : index
    %c0_9 = arith.constant 0 : index
    %13 = vector.load %arg12[%c0_8, %c0_9] : memref<64x32xf32, #tpu.memory_space<vmem>>, vector<64x32xf32>
    %14 = arith.mulf %12, %13 : vector<64x32xf32>
    %c0_10 = arith.constant 0 : index
    %c0_11 = arith.constant 0 : index
    %15 = vector.load %arg6[%c0_10, %c0_11] : memref<64x16xf32, #tpu.memory_space<vmem>>, vector<64x16xf32>
    %c0_12 = arith.constant 0 : index
    %c0_13 = arith.constant 0 : index
    %16 = vector.load %arg7[%c0_12, %c0_13] : memref<64x16xf32, #tpu.memory_space<vmem>>, vector<64x16xf32>
    %c0_14 = arith.constant 0 : index
    %c0_15 = arith.constant 0 : index
    %17 = vector.load %arg8[%c0_14, %c0_15] : memref<64x16xf32, #tpu.memory_space<vmem>>, vector<64x16xf32>
    %c0_16 = arith.constant 0 : index
    %c0_17 = arith.constant 0 : index
    %18 = vector.load %arg9[%c0_16, %c0_17] : memref<64x16xf32, #tpu.memory_space<vmem>>, vector<64x16xf32>
    %19 = arith.mulf %8, %15 : vector<64x16xf32>
    %20 = arith.mulf %9, %16 : vector<64x16xf32>
    %21 = arith.subf %19, %20 : vector<64x16xf32>
    %22 = arith.mulf %9, %15 : vector<64x16xf32>
    %23 = arith.mulf %8, %16 : vector<64x16xf32>
    %24 = arith.addf %22, %23 : vector<64x16xf32>
    %25 = arith.mulf %10, %17 : vector<64x16xf32>
    %26 = arith.mulf %11, %18 : vector<64x16xf32>
    %27 = arith.subf %25, %26 : vector<64x16xf32>
    %28 = arith.mulf %11, %17 : vector<64x16xf32>
    %29 = arith.mulf %10, %18 : vector<64x16xf32>
    %30 = arith.addf %28, %29 : vector<64x16xf32>
    %cst_18 = arith.constant dense<0.000000e+00> : vector<64x64xf32>
    %31 = tpu.matmul %21, %27, %cst_18 {dimension_numbers = #tpu.dot_dimension_numbers<[1], [1], [0], [0], [0, 0, 1, 0], [], []>} : vector<64x16xf32>, vector<64x16xf32>, vector<64x64xf32> -> vector<64x64xf32>
    %cst_19 = arith.constant dense<0.000000e+00> : vector<64x64xf32>
    %32 = tpu.matmul %24, %30, %cst_19 {dimension_numbers = #tpu.dot_dimension_numbers<[1], [1], [0], [0], [0, 0, 1, 0], [], []>} : vector<64x16xf32>, vector<64x16xf32>, vector<64x64xf32> -> vector<64x64xf32>
    %33 = arith.addf %31, %32 : vector<64x64xf32>
    %c0_20 = arith.constant 0 : index
    %c0_21 = arith.constant 0 : index
    %34 = vector.load %arg13[%c0_20, %c0_21] : memref<64x64xf32, #tpu.memory_space<vmem>>, vector<64x64xf32>
    %35 = arith.addf %33, %34 : vector<64x64xf32>
    %cst_22 = arith.constant dense<0xFF800000> : vector<64xf32>
    %36 = vector.multi_reduction <maximumf>, %35, %cst_22 [1] : vector<64x64xf32> to vector<64xf32>
    %37 = vector.shape_cast %36 : vector<64xf32> to vector<64x1xf32>
    %38 = vector.broadcast %37 : vector<64x1xf32> to vector<64x64xf32>
    %39 = arith.subf %35, %38 : vector<64x64xf32>
    %40 = math.exp %39 : vector<64x64xf32>
    %cst_23 = arith.constant dense<0.000000e+00> : vector<64xf32>
    %41 = vector.multi_reduction <add>, %40, %cst_23 [1] : vector<64x64xf32> to vector<64xf32>
    %42 = vector.shape_cast %41 : vector<64xf32> to vector<64x1xf32>
    %cst_24 = arith.constant dense<0.000000e+00> : vector<64x32xf32>
    %43 = tpu.matmul %40, %14, %cst_24 {dimension_numbers = #tpu.dot_dimension_numbers<[1], [0], [0], [1], [0, 0, 1, 1], [], []>} : vector<64x64xf32>, vector<64x32xf32>, vector<64x32xf32> -> vector<64x32xf32>
    %44 = tpu.reciprocal %42 {approx = true} : vector<64x1xf32> -> vector<64x1xf32>
    %45 = vector.broadcast %44 : vector<64x1xf32> to vector<64x32xf32>
    %46 = arith.mulf %43, %45 : vector<64x32xf32>
    %c0_25 = arith.constant 0 : index
    %c0_26 = arith.constant 0 : index
    %47 = vector.load %arg11[%c0_25, %c0_26] : memref<16x64xf32, #tpu.memory_space<vmem>>, vector<16x64xf32>
    %cst_27 = arith.constant dense<0.000000e+00> : vector<16x32xf32>
    %48 = tpu.matmul %47, %46, %cst_27 {dimension_numbers = #tpu.dot_dimension_numbers<[1], [0], [0], [1], [0, 0, 1, 1], [], []>} : vector<16x64xf32>, vector<64x32xf32>, vector<16x32xf32> -> vector<16x32xf32>
    %49 = arith.negf %48 : vector<16x32xf32>
    %50 = math.exp %49 : vector<16x32xf32>
    %cst_28 = arith.constant 1.000000e+00 : f32
    %51 = vector.broadcast %cst_28 : f32 to vector<16x32xf32>
    %52 = arith.addf %51, %50 : vector<16x32xf32>
    %53 = arith.divf %51, %52 : vector<16x32xf32>
    %54 = arith.mulf %48, %53 : vector<16x32xf32>
    %c0_29 = arith.constant 0 : index
    %c0_30 = arith.constant 0 : index
    %55 = vector.load %arg4[%c0_29, %c0_30] : memref<32x32xf32, #tpu.memory_space<vmem>>, vector<32x32xf32>
    %cst_31 = arith.constant dense<0.000000e+00> : vector<16x32xf32>
    %56 = tpu.matmul %54, %55, %cst_31 {dimension_numbers = #tpu.dot_dimension_numbers<[1], [0], [0], [1], [0, 0, 1, 1], [], []>} : vector<16x32xf32>, vector<32x32xf32>, vector<16x32xf32> -> vector<16x32xf32>
    %c0_32 = arith.constant 0 : index
    %c0_33 = arith.constant 0 : index
    %57 = vector.load %arg5[%c0_32, %c0_33] : memref<1x32xf32, #tpu.memory_space<vmem>>, vector<1x32xf32>
    %58 = vector.broadcast %57 : vector<1x32xf32> to vector<16x32xf32>
    %59 = arith.addf %56, %58 : vector<16x32xf32>
    %c0_34 = arith.constant 0 : index
    %c0_35 = arith.constant 0 : index
    %60 = vector.load %arg14[%c0_34, %c0_35] : memref<16x32xf32, #tpu.memory_space<vmem>>, vector<16x32xf32>
    tpu.vector_store %arg14[%c0_34, %c0_35], %59 {strides = array<i32>} : memref<16x32xf32, #tpu.memory_space<vmem>>, vector<16x32xf32>,
    return
  }
  func.func @transform_0(%arg0: i32) -> (i32, i32) {
    %c0_i32 = arith.constant 0 : i32
    %c0_i32_0 = arith.constant 0 : i32
    %c0_i32_1 = arith.constant 0 : i32
    return %c0_i32, %c0_i32_0 : i32, i32
  }
  func.func @transform_1(%arg0: i32) -> (i32, i32) {
    %c0_i32 = arith.constant 0 : i32
    %c0_i32_0 = arith.constant 0 : i32
    %c0_i32_1 = arith.constant 0 : i32
    return %c0_i32, %c0_i32_0 : i32, i32
  }
  func.func @transform_2(%arg0: i32) -> (i32, i32) {
    %c0_i32 = arith.constant 0 : i32
    %c0_i32_0 = arith.constant 0 : i32
    %c0_i32_1 = arith.constant 0 : i32
    return %c0_i32, %c0_i32_0 : i32, i32
  }
  func.func @transform_3(%arg0: i32) -> (i32, i32) {
    %c0_i32 = arith.constant 0 : i32
    %c0_i32_0 = arith.constant 0 : i32
    %c0_i32_1 = arith.constant 0 : i32
    return %c0_i32, %c0_i32_0 : i32, i32
  }
  func.func @transform_4(%arg0: i32) -> (i32, i32) {
    %c0_i32 = arith.constant 0 : i32
    %c0_i32_0 = arith.constant 0 : i32
    %c0_i32_1 = arith.constant 0 : i32
    return %c0_i32, %c0_i32_0 : i32, i32
  }
  func.func @transform_5(%arg0: i32) -> (i32, i32) {
    %c0_i32 = arith.constant 0 : i32
    %c0_i32_0 = arith.constant 0 : i32
    %c0_i32_1 = arith.constant 0 : i32
    return %c0_i32, %c0_i32_0 : i32, i32
  }
  func.func @transform_6(%arg0: i32) -> (i32, i32) {
    %c0_i32 = arith.constant 0 : i32
    %c0_i32_0 = arith.constant 0 : i32
    %c0_i32_1 = arith.constant 0 : i32
    return %c0_i32, %c0_i32_0 : i32, i32
  }
  func.func @transform_7(%arg0: i32) -> (i32, i32) {
    %c0_i32 = arith.constant 0 : i32
    %c0_i32_0 = arith.constant 0 : i32
    %c0_i32_1 = arith.constant 0 : i32
    return %c0_i32, %c0_i32_0 : i32, i32
  }
  func.func @transform_8(%arg0: i32) -> (i32, i32) {
    %c0_i32 = arith.constant 0 : i32
    %c0_i32_0 = arith.constant 0 : i32
    %c0_i32_1 = arith.constant 0 : i32
    return %c0_i32, %c0_i32_0 : i32, i32
  }
  func.func @transform_9(%arg0: i32) -> (i32, i32) {
    %c0_i32 = arith.constant 0 : i32
    %c0_i32_0 = arith.constant 0 : i32
    %c0_i32_1 = arith.constant 0 : i32
    return %c0_i32, %c0_i32_0 : i32, i32
  }
  func.func @transform_10(%arg0: i32) -> (i32, i32) {
    %c0_i32 = arith.constant 0 : i32
    %c0_i32_0 = arith.constant 0 : i32
    %c0_i32_1 = arith.constant 0 : i32
    return %c0_i32, %c0_i32_0 : i32, i32
  }
  func.func @transform_11(%arg0: i32) -> (i32, i32) {
    %c0_i32 = arith.constant 0 : i32
    %c0_i32_0 = arith.constant 0 : i32
    %c0_i32_1 = arith.constant 0 : i32
    return %c0_i32, %c0_i32_0 : i32, i32
  }
  func.func @transform_12(%arg0: i32) -> (i32, i32) {
    %c0_i32 = arith.constant 0 : i32
    %c0_i32_0 = arith.constant 0 : i32
    %c0_i32_1 = arith.constant 0 : i32
    return %c0_i32, %c0_i32_0 : i32, i32
  }
  func.func @transform_13(%arg0: i32) -> (i32, i32) {
    %c0_i32 = arith.constant 0 : i32
    %c0_i32_0 = arith.constant 0 : i32
    %c0_i32_1 = arith.constant 0 : i32
    return %c0_i32, %c0_i32_0 : i32, i32
  }
}

</mosaic_0001>

<llo_original>
// kernel: tpu_custom_call.1
$region0: #{tpu_custom_call.1}
  #allocation0 [shape = 'u32[]', space=smem, size = 0x4, offset = 0x4, fixed_abs, tag = 'smem constant byte address 0x4 - core index']
  #allocation1 [shape = 'u32[144,128]{1,0:T(1,128)}', space=vmem, size = 0x12000, scoped, tag = 'internal scratch']
  %s0 = inlined_call_operand.vmem [shape: f32[16,32], index: 0, kind: input, shape index: {}]
  %s1 = inlined_call_operand.vmem [shape: f32[32,96], index: 1, kind: input, shape index: {}]
  %s2 = inlined_call_operand.vmem [shape: f32[1,96], index: 2, kind: input, shape index: {}]
  %s3 = inlined_call_operand.vmem [shape: f32[32,32], index: 3, kind: input, shape index: {}]
  %s4 = inlined_call_operand.vmem [shape: f32[1,32], index: 4, kind: input, shape index: {}]
  %s5 = inlined_call_operand.vmem [shape: f32[64,16], index: 5, kind: input, shape index: {}]
  %s6 = inlined_call_operand.vmem [shape: f32[64,16], index: 6, kind: input, shape index: {}]
  %s7 = inlined_call_operand.vmem [shape: f32[64,16], index: 7, kind: input, shape index: {}]
  %s8 = inlined_call_operand.vmem [shape: f32[64,16], index: 8, kind: input, shape index: {}]
  %s9 = inlined_call_operand.vmem [shape: f32[64,16], index: 9, kind: input, shape index: {}]
  %s10 = inlined_call_operand.vmem [shape: f32[16,64], index: 10, kind: input, shape index: {}]
  %s11 = inlined_call_operand.vmem [shape: f32[64,32], index: 11, kind: input, shape index: {}]
  %s12 = inlined_call_operand.vmem [shape: f32[64,64], index: 12, kind: input, shape index: {}]
  %s13 = inlined_call_operand.hbm [shape: f32[16,32], index: 13, kind: output, shape index: {}]
  %s14 = sld [smem:[#allocation0]]
  $region62: #{tpu_custom_call.1} parent=0
    _
  %s16 = ssub.s32 1, %s14
  %s17 = scalar_select 0, %s16, %s14
  $region1: #{tpu_custom_call.1} parent=0
    #allocation2 [shape = 'u8[8192]{0}', space=vmem, size = 0x2000, scoped, tag = 'output window, operand 0, single buffered']
    #allocation3 [shape = 's32[1]{0}', space=sflag, size = 0x4, scoped, tag = 'scoped memory for tpu_custom_call.1']
    %18 = vsyncpa [#allocation3], 0
    // Predicated region
    $region2: #{tpu_custom_call.1} parent=1 // pred_check
      _
    $region3: #{tpu_custom_call.1} parent=1 // pred_check_branch
      %20 = sbr.rel (0) target = $region5
    $region4: #{tpu_custom_call.1} parent=1 // pred_region
      _
    $region5: #{tpu_custom_call.1} parent=1 // pred_fallthru
      _
    // Predicated region
    $region6: #{tpu_custom_call.1} parent=1 // pred_check
      _
    $region7: #{tpu_custom_call.1} parent=1 // pred_check_branch
      %22 = sbr.rel (0) target = $region9
    $region8: #{tpu_custom_call.1} parent=1 // pred_region
      _
    $region9: #{tpu_custom_call.1} parent=1 // pred_fallthru
      _
    // Predicated region
    $region10: #{tpu_custom_call.1} parent=1 // pred_check
      _
    $region11: #{tpu_custom_call.1} parent=1 // pred_check_branch
      %24 = sbr.rel (0) target = $region13
    $region12: #{tpu_custom_call.1} parent=1 // pred_region
      _
    $region13: #{tpu_custom_call.1} parent=1 // pred_fallthru
      _
    // Predicated region
    $region14: #{tpu_custom_call.1} parent=1 // pred_check
      _
    $region15: #{tpu_custom_call.1} parent=1 // pred_check_branch
      %26 = sbr.rel (0) target = $region17
    $region16: #{tpu_custom_call.1} parent=1 // pred_region
      _
    $region17: #{tpu_custom_call.1} parent=1 // pred_fallthru
      _
    // Predicated region
    $region18: #{tpu_custom_call.1} parent=1 // pred_check
      _
    $region19: #{tpu_custom_call.1} parent=1 // pred_check_branch
      %28 = sbr.rel (0) target = $region21
    $region20: #{tpu_custom_call.1} parent=1 // pred_region
      _
    $region21: #{tpu_custom_call.1} parent=1 // pred_fallthru
      _
    // Predicated region
    $region22: #{tpu_custom_call.1} parent=1 // pred_check
      _
    $region23: #{tpu_custom_call.1} parent=1 // pred_check_branch
      %30 = sbr.rel (0) target = $region25
    $region24: #{tpu_custom_call.1} parent=1 // pred_region
      _
    $region25: #{tpu_custom_call.1} parent=1 // pred_fallthru
      _
    // Predicated region
    $region26: #{tpu_custom_call.1} parent=1 // pred_check
      _
    $region27: #{tpu_custom_call.1} parent=1 // pred_check_branch
      %32 = sbr.rel (0) target = $region29
    $region28: #{tpu_custom_call.1} parent=1 // pred_region
      _
    $region29: #{tpu_custom_call.1} parent=1 // pred_fallthru
      _
    // Predicated region
    $region30: #{tpu_custom_call.1} parent=1 // pred_check
      _
    $region31: #{tpu_custom_call.1} parent=1 // pred_check_branch
      %34 = sbr.rel (0) target = $region33
    $region32: #{tpu_custom_call.1} parent=1 // pred_region
      _
    $region33: #{tpu_custom_call.1} parent=1 // pred_fallthru
      _
    // Predicated region
    $region34: #{tpu_custom_call.1} parent=1 // pred_check
      _
    $region35: #{tpu_custom_call.1} parent=1 // pred_check_branch
      %36 = sbr.rel (0) target = $region37
    $region36: #{tpu_custom_call.1} parent=1 // pred_region
      _
    $region37: #{tpu_custom_call.1} parent=1 // pred_fallthru
      _
    // Predicated region
    $region38: #{tpu_custom_call.1} parent=1 // pred_check
      _
    $region39: #{tpu_custom_call.1} parent=1 // pred_check_branch
      %38 = sbr.rel (0) target = $region41
    $region40: #{tpu_custom_call.1} parent=1 // pred_region
      _
    $region41: #{tpu_custom_call.1} parent=1 // pred_fallthru
      _
    // Predicated region
    $region42: #{tpu_custom_call.1} parent=1 // pred_check
      _
    $region43: #{tpu_custom_call.1} parent=1 // pred_check_branch
      %40 = sbr.rel (0) target = $region45
    $region44: #{tpu_custom_call.1} parent=1 // pred_region
      _
    $region45: #{tpu_custom_call.1} parent=1 // pred_fallthru
      _
    // Predicated region
    $region46: #{tpu_custom_call.1} parent=1 // pred_check
      _
    $region47: #{tpu_custom_call.1} parent=1 // pred_check_branch
      %42 = sbr.rel (0) target = $region49
    $region48: #{tpu_custom_call.1} parent=1 // pred_region
      _
    $region49: #{tpu_custom_call.1} parent=1 // pred_fallthru
      _
    // Predicated region
    $region50: #{tpu_custom_call.1} parent=1 // pred_check
      _
    $region51: #{tpu_custom_call.1} parent=1 // pred_check_branch
      %44 = sbr.rel (0) target = $region53
    $region52: #{tpu_custom_call.1} parent=1 // pred_region
      _
    $region53: #{tpu_custom_call.1} parent=1 // pred_fallthru
      _
    %v45 = vld [vmem:[%s0] sm:$0xff]
    %v46 = vld [vmem:[%s0 + $0x8] sm:$0xff]
    %v47 = vld [vmem:[%s1] sm:$0xff]
    %v48 = vld [vmem:[%s1 + $0x8] sm:$0xff]
    %v49 = vld [vmem:[%s1 + $0x10] sm:$0xff]
    %v50 = vld [vmem:[%s1 + $0x18] sm:$0xff]
    %v51 = vld [vmem:[%s2] sm:$0x1]
    %v53 = vlaneseq
    %v54 = vshrl.u32 %v53, 7
    %v55 = vsub.s32 0, %v54
    %v56 = vrot.slane %v51, %v55
    %vm58 = vcmask 261120
    %v60 = vsel %vm58, %v45, 0
    %v63 = vsel %vm58, %v46, 0
    %65 = vmatprep.subr.mxu0 0.0
    %66 = vmatpush1.msra.mxu0 %v47
    %67 = vmatprep.subr.mxu0 0.0
    %68 = vmatpush1.msra.mxu0 %v48
    %69 = vmatprep.subr.mxu0 0.0
    %70 = vmatpush1.msra.mxu0 %v49
    %71 = vmatprep.subr.mxu0 0.0
    %72 = vmatpush1.msra.mxu0 %v50
    %73 = vmatprep.subr.mxu0 0.0
    %74 = vmatpush1.msra.mxu0 0.0
    %75 = vmatprep.subr.mxu0 0.0
    %76 = vmatpush1.msra.mxu0 0.0
    %77 = vmatprep.subr.mxu0 0.0
    %78 = vmatpush1.msra.mxu0 0.0
    %79 = vmatprep.subr.mxu0 0.0
    %80 = vmatpush1.msra.mxu0 0.0
    %81 = vmatprep.subr.mxu0 0.0
    %82 = vmatpush1.msra.mxu0 0.0
    %83 = vmatprep.subr.mxu0 0.0
    %84 = vmatpush1.msra.mxu0 0.0
    %85 = vmatprep.subr.mxu0 0.0
    %86 = vmatpush1.msra.mxu0 0.0
    %87 = vmatprep.subr.mxu0 0.0
    %88 = vmatpush1.msra.mxu0 0.0
    %89 = vmatprep.subr.mxu0 0.0
    %90 = vmatpush1.msra.mxu0 0.0
    %91 = vmatprep.subr.mxu0 0.0
    %92 = vmatpush1.msra.mxu0 0.0
    %93 = vmatprep.subr.mxu0 0.0
    %94 = vmatpush1.msra.mxu0 0.0
    %95 = vmatprep.subr.mxu0 0.0
    %96 = vmatpush1.msra.mxu0 0.0
    %97 = vmatprep.subr.mxu0 0.0
    %98 = vmatpush1.msra.mxu0 0.0
    %99 = vmatprep.subr.mxu0 0.0
    %100 = vmatpush1.msra.mxu0 0.0
    %101 = vmatprep.subr.mxu0 0.0
    %102 = vmatpush1.msra.mxu0 0.0
    %103 = vmatprep.subr.mxu0 0.0
    %104 = vmatpush1.msra.mxu0 0.0
    %105 = vmatprep.subr.mxu0 0.0
    %106 = vmatpush1.msra.mxu0 0.0
    %107 = vmatprep.subr.mxu0 0.0
    %108 = vmatpush1.msra.mxu0 0.0
    %109 = vmatprep.subr.mxu0 0.0
    %110 = vmatpush1.msra.mxu0 0.0
    %111 = vmatprep.subr.mxu0 0.0
    %112 = vmatpush1.msra.mxu0 0.0
    %113 = vmatprep.subr.mxu0 0.0
    %114 = vmatpush1.msra.mxu0 0.0
    %115 = vmatprep.subr.mxu0 0.0
    %116 = vmatpush1.msra.mxu0 0.0
    %117 = vmatprep.subr.mxu0 0.0
    %118 = vmatpush1.msra.mxu0 0.0
    %119 = vmatprep.subr.mxu0 0.0
    %120 = vmatpush1.msra.mxu0 0.0
    %121 = vmatprep.subr.mxu0 0.0
    %122 = vmatpush1.msra.mxu0 0.0
    %123 = vmatprep.subr.mxu0 0.0
    %124 = vmatpush1.msra.mxu0 0.0
    %125 = vmatprep.subr.mxu0 0.0
    %126 = vmatpush1.msra.mxu0 0.0
    %127 = vmatprep.subr.mxu0 0.0
    %128 = vmatpush1.msra.mxu0 0.0
    %129 = vmatprep.mubr.f32.mxu0 0.0
    %130 = vmatmul.mubr.f32.gmra.mrb[0].mxu0 %v60
    %v131 = vpop.f32.mrb[0].mxu0
    %v132 = vadd.f32 %v56, %v131
    %v133 = vpop.f32.mrb[0].mxu0
    %134 = vmatprep.mubr.f32.mxu0 0.0
    %135 = vmatmul.mubr.f32.gmra.mrb[0].mxu0 %v63
    %v136 = vpop.f32.mrb[0].mxu0
    %v137 = vadd.f32 %v56, %v136
    %v138 = vpop.f32.mrb[0].mxu0
    %139 = vdwg.mxu0
    %v140 = vld [vmem:[%s9] sm:$0xff]
    %v141 = vld [vmem:[%s9 + $0x8] sm:$0xff]
    %v142 = vld [vmem:[%s9 + $0x10] sm:$0xff]
    %v143 = vld [vmem:[%s9 + $0x18] sm:$0xff]
    %v144 = vld [vmem:[%s9 + $0x20] sm:$0xff]
    %v145 = vld [vmem:[%s9 + $0x28] sm:$0xff]
    %v146 = vld [vmem:[%s9 + $0x30] sm:$0xff]
    %v147 = vld [vmem:[%s9 + $0x38] sm:$0xff]
    %vm148 = vcmask 130048
    %v150 = vsel %vm148, %v140, 0
    %v153 = vsel %vm148, %v141, 0
    %v156 = vsel %vm148, %v142, 0
    %v159 = vsel %vm148, %v143, 0
    %v162 = vsel %vm148, %v144, 0
    %v165 = vsel %vm148, %v145, 0
    %v168 = vsel %vm148, %v146, 0
    %v171 = vsel %vm148, %v147, 0
    %173 = vmatprep.subr.mxu0 0.0
    %174 = vmatpush1.msra.mxu0 %v132
    %175 = vmatprep.subr.mxu0 0.0
    %176 = vmatpush1.msra.mxu0 %v137
    %177 = vmatprep.subr.mxu0 0.0
    %178 = vmatpush1.msra.mxu0 0.0
    %179 = vmatprep.subr.mxu0 0.0
    %180 = vmatpush1.msra.mxu0 0.0
    %181 = vmatprep.subr.mxu0 0.0
    %182 = vmatpush1.msra.mxu0 0.0
    %183 = vmatprep.subr.mxu0 0.0
    %184 = vmatpush1.msra.mxu0 0.0
    %185 = vmatprep.subr.mxu0 0.0
    %186 = vmatpush1.msra.mxu0 0.0
    %187 = vmatprep.subr.mxu0 0.0
    %188 = vmatpush1.msra.mxu0 0.0
    %189 = vmatprep.subr.mxu0 0.0
    %190 = vmatpush1.msra.mxu0 0.0
    %191 = vmatprep.subr.mxu0 0.0
    %192 = vmatpush1.msra.mxu0 0.0
    %193 = vmatprep.subr.mxu0 0.0
    %194 = vmatpush1.msra.mxu0 0.0
    %195 = vmatprep.subr.mxu0 0.0
    %196 = vmatpush1.msra.mxu0 0.0
    %197 = vmatprep.subr.mxu0 0.0
    %198 = vmatpush1.msra.mxu0 0.0
    %199 = vmatprep.subr.mxu0 0.0
    %200 = vmatpush1.msra.mxu0 0.0
    %201 = vmatprep.subr.mxu0 0.0
    %202 = vmatpush1.msra.mxu0 0.0
    %203 = vmatprep.subr.mxu0 0.0
    %204 = vmatpush1.msra.mxu0 0.0
    %205 = vmatprep.subr.mxu0 0.0
    %206 = vmatpush1.msra.mxu0 0.0
    %207 = vmatprep.subr.mxu0 0.0
    %208 = vmatpush1.msra.mxu0 0.0
    %209 = vmatprep.subr.mxu0 0.0
    %210 = vmatpush1.msra.mxu0 0.0
    %211 = vmatprep.subr.mxu0 0.0
    %212 = vmatpush1.msra.mxu0 0.0
    %213 = vmatprep.subr.mxu0 0.0
    %214 = vmatpush1.msra.mxu0 0.0
    %215 = vmatprep.subr.mxu0 0.0
    %216 = vmatpush1.msra.mxu0 0.0
    %217 = vmatprep.subr.mxu0 0.0
    %218 = vmatpush1.msra.mxu0 0.0
    %219 = vmatprep.subr.mxu0 0.0
    %220 = vmatpush1.msra.mxu0 0.0
    %221 = vmatprep.subr.mxu0 0.0
    %222 = vmatpush1.msra.mxu0 0.0
    %223 = vmatprep.subr.mxu0 0.0
    %224 = vmatpush1.msra.mxu0 0.0
    %225 = vmatprep.subr.mxu0 0.0
    %226 = vmatpush1.msra.mxu0 0.0
    %227 = vmatprep.subr.mxu0 0.0
    %228 = vmatpush1.msra.mxu0 0.0
    %229 = vmatprep.subr.mxu0 0.0
    %230 = vmatpush1.msra.mxu0 0.0
    %231 = vmatprep.subr.mxu0 0.0
    %232 = vmatpush1.msra.mxu0 0.0
    %233 = vmatprep.subr.mxu0 0.0
    %234 = vmatpush1.msra.mxu0 0.0
    %235 = vmatprep.subr.mxu0 0.0
    %236 = vmatpush1.msra.mxu0 0.0
    %237 = vmatprep.mubr.f32.mxu0 0.0
    %238 = vmatmul.mubr.f32.gmra.mrb[0].mxu0 %v150
    %v239 = vpop.f32.mrb[0].mxu0
    %v240 = vadd.f32 0.0, %v239
    %v241 = vpop.f32.mrb[0].mxu0
    %242 = vmatprep.mubr.f32.mxu0 0.0
    %243 = vmatmul.mubr.f32.gmra.mrb[0].mxu0 %v153
    %v244 = vpop.f32.mrb[0].mxu0
    %v245 = vadd.f32 0.0, %v244
    %v246 = vpop.f32.mrb[0].mxu0
    %247 = vmatprep.mubr.f32.mxu0 0.0
    %248 = vmatmul.mubr.f32.gmra.mrb[0].mxu0 %v156
    %v249 = vpop.f32.mrb[0].mxu0
    %v250 = vadd.f32 0.0, %v249
    %v251 = vpop.f32.mrb[0].mxu0
    %252 = vmatprep.mubr.f32.mxu0 0.0
    %253 = vmatmul.mubr.f32.gmra.mrb[0].mxu0 %v159
    %v254 = vpop.f32.mrb[0].mxu0
    %v255 = vadd.f32 0.0, %v254
    %v256 = vpop.f32.mrb[0].mxu0
    %257 = vmatprep.mubr.f32.mxu0 0.0
    %258 = vmatmul.mubr.f32.gmra.mrb[0].mxu0 %v162
    %v259 = vpop.f32.mrb[0].mxu0
    %v260 = vadd.f32 0.0, %v259
    %v261 = vpop.f32.mrb[0].mxu0
    %262 = vmatprep.mubr.f32.mxu0 0.0
    %263 = vmatmul.mubr.f32.gmra.mrb[0].mxu0 %v165
    %v264 = vpop.f32.mrb[0].mxu0
    %v265 = vadd.f32 0.0, %v264
    %v266 = vpop.f32.mrb[0].mxu0
    %267 = vmatprep.mubr.f32.mxu0 0.0
    %268 = vmatmul.mubr.f32.gmra.mrb[0].mxu0 %v168
    %v269 = vpop.f32.mrb[0].mxu0
    %v270 = vadd.f32 0.0, %v269
    %v271 = vpop.f32.mrb[0].mxu0
    %272 = vmatprep.mubr.f32.mxu0 0.0
    %273 = vmatmul.mubr.f32.gmra.mrb[0].mxu0 %v171
    %v274 = vpop.f32.mrb[0].mxu0
    %v275 = vadd.f32 0.0, %v274
    %v276 = vpop.f32.mrb[0].mxu0
    %277 = vdwg.mxu0
    %v278 = vld [vmem:[%s11] sm:$0xff]
    %v279 = vld [vmem:[%s11 + $0x8] sm:$0xff]
    %v280 = vld [vmem:[%s11 + $0x10] sm:$0xff]
    %v281 = vld [vmem:[%s11 + $0x18] sm:$0xff]
    %v282 = vld [vmem:[%s11 + $0x20] sm:$0xff]
    %v283 = vld [vmem:[%s11 + $0x28] sm:$0xff]
    %v284 = vld [vmem:[%s11 + $0x30] sm:$0xff]
    %v285 = vld [vmem:[%s11 + $0x38] sm:$0xff]
    %294 = vrot.lane.b32.xlu0 %v278, 64
    %v295 = vpop.permute.xlu0 %294
    %296 = vrot.lane.b32.xlu0 %v279, 64
    %v297 = vpop.permute.xlu0 %296
    %298 = vrot.lane.b32.xlu0 %v280, 64
    %v299 = vpop.permute.xlu0 %298
    %300 = vrot.lane.b32.xlu0 %v281, 64
    %v301 = vpop.permute.xlu0 %300
    %302 = vrot.lane.b32.xlu0 %v282, 64
    %v303 = vpop.permute.xlu0 %302
    %304 = vrot.lane.b32.xlu0 %v283, 64
    %v305 = vpop.permute.xlu0 %304
    %306 = vrot.lane.b32.xlu0 %v284, 64
    %v307 = vpop.permute.xlu0 %306
    %308 = vrot.lane.b32.xlu0 %v285, 64
    %v309 = vpop.permute.xlu0 %308
    %v318 = vmul.f32 %v240, %v295
    %v319 = vmul.f32 %v245, %v297
    %v320 = vmul.f32 %v250, %v299
    %v321 = vmul.f32 %v255, %v301
    %v322 = vmul.f32 %v260, %v303
    %v323 = vmul.f32 %v265, %v305
    %v324 = vmul.f32 %v270, %v307
    %v325 = vmul.f32 %v275, %v309
    %v326 = vld [vmem:[%s5] sm:$0xff]
    %v327 = vld [vmem:[%s5 + $0x8] sm:$0xff]
    %v328 = vld [vmem:[%s5 + $0x10] sm:$0xff]
    %v329 = vld [vmem:[%s5 + $0x18] sm:$0xff]
    %v330 = vld [vmem:[%s5 + $0x20] sm:$0xff]
    %v331 = vld [vmem:[%s5 + $0x28] sm:$0xff]
    %v332 = vld [vmem:[%s5 + $0x30] sm:$0xff]
    %v333 = vld [vmem:[%s5 + $0x38] sm:$0xff]
    %v334 = vld [vmem:[%s6] sm:$0xff]
    %v335 = vld [vmem:[%s6 + $0x8] sm:$0xff]
    %v336 = vld [vmem:[%s6 + $0x10] sm:$0xff]
    %v337 = vld [vmem:[%s6 + $0x18] sm:$0xff]
    %v338 = vld [vmem:[%s6 + $0x20] sm:$0xff]
    %v339 = vld [vmem:[%s6 + $0x28] sm:$0xff]
    %v340 = vld [vmem:[%s6 + $0x30] sm:$0xff]
    %v341 = vld [vmem:[%s6 + $0x38] sm:$0xff]
    %v342 = vld [vmem:[%s7] sm:$0xff]
    %v343 = vld [vmem:[%s7 + $0x8] sm:$0xff]
    %v344 = vld [vmem:[%s7 + $0x10] sm:$0xff]
    %v345 = vld [vmem:[%s7 + $0x18] sm:$0xff]
    %v346 = vld [vmem:[%s7 + $0x20] sm:$0xff]
    %v347 = vld [vmem:[%s7 + $0x28] sm:$0xff]
    %v348 = vld [vmem:[%s7 + $0x30] sm:$0xff]
    %v349 = vld [vmem:[%s7 + $0x38] sm:$0xff]
    %v350 = vld [vmem:[%s8] sm:$0xff]
    %v351 = vld [vmem:[%s8 + $0x8] sm:$0xff]
    %v352 = vld [vmem:[%s8 + $0x10] sm:$0xff]
    %v353 = vld [vmem:[%s8 + $0x18] sm:$0xff]
    %v354 = vld [vmem:[%s8 + $0x20] sm:$0xff]
    %v355 = vld [vmem:[%s8 + $0x28] sm:$0xff]
    %v356 = vld [vmem:[%s8 + $0x30] sm:$0xff]
    %v357 = vld [vmem:[%s8 + $0x38] sm:$0xff]
    %v358 = vmul.f32 %v240, %v326
    %v359 = vmul.f32 %v245, %v327
    %v360 = vmul.f32 %v250, %v328
    %v361 = vmul.f32 %v255, %v329
    %v362 = vmul.f32 %v260, %v330
    %v363 = vmul.f32 %v265, %v331
    %v364 = vmul.f32 %v270, %v332
    %v365 = vmul.f32 %v275, %v333
    %374 = vrot.lane.b32.xlu0 %v334, 16
    %v375 = vpop.permute.xlu0 %374
    %376 = vrot.lane.b32.xlu0 %v335, 16
    %v377 = vpop.permute.xlu0 %376
    %378 = vrot.lane.b32.xlu0 %v336, 16
    %v379 = vpop.permute.xlu0 %378
    %380 = vrot.lane.b32.xlu0 %v337, 16
    %v381 = vpop.permute.xlu0 %380
    %382 = vrot.lane.b32.xlu0 %v338, 16
    %v383 = vpop.permute.xlu0 %382
    %384 = vrot.lane.b32.xlu0 %v339, 16
    %v385 = vpop.permute.xlu0 %384
    %386 = vrot.lane.b32.xlu0 %v340, 16
    %v387 = vpop.permute.xlu0 %386
    %388 = vrot.lane.b32.xlu0 %v341, 16
    %v389 = vpop.permute.xlu0 %388
    %v398 = vmul.f32 %v240, %v375
    %v399 = vmul.f32 %v245, %v377
    %v400 = vmul.f32 %v250, %v379
    %v401 = vmul.f32 %v255, %v381
    %v402 = vmul.f32 %v260, %v383
    %v403 = vmul.f32 %v265, %v385
    %v404 = vmul.f32 %v270, %v387
    %v405 = vmul.f32 %v275, %v389
    %414 = vrot.lane.b32.xlu0 %v398, 112
    %v415 = vpop.permute.xlu0 %414
    %416 = vrot.lane.b32.xlu0 %v399, 112
    %v417 = vpop.permute.xlu0 %416
    %418 = vrot.lane.b32.xlu0 %v400, 112
    %v419 = vpop.permute.xlu0 %418
    %420 = vrot.lane.b32.xlu0 %v401, 112
    %v421 = vpop.permute.xlu0 %420
    %422 = vrot.lane.b32.xlu0 %v402, 112
    %v423 = vpop.permute.xlu0 %422
    %424 = vrot.lane.b32.xlu0 %v403, 112
    %v425 = vpop.permute.xlu0 %424
    %426 = vrot.lane.b32.xlu0 %v404, 112
    %v427 = vpop.permute.xlu0 %426
    %428 = vrot.lane.b32.xlu0 %v405, 112
    %v429 = vpop.permute.xlu0 %428
    %v438 = vsub.f32 %v358, %v415
    %v439 = vsub.f32 %v359, %v417
    %v440 = vsub.f32 %v360, %v419
    %v441 = vsub.f32 %v361, %v421
    %v442 = vsub.f32 %v362, %v423
    %v443 = vsub.f32 %v363, %v425
    %v444 = vsub.f32 %v364, %v427
    %v445 = vsub.f32 %v365, %v429
    %454 = vrot.lane.b32.xlu0 %v326, 16
    %v455 = vpop.permute.xlu0 %454
    %456 = vrot.lane.b32.xlu0 %v327, 16
    %v457 = vpop.permute.xlu0 %456
    %458 = vrot.lane.b32.xlu0 %v328, 16
    %v459 = vpop.permute.xlu0 %458
    %460 = vrot.lane.b32.xlu0 %v329, 16
    %v461 = vpop.permute.xlu0 %460
    %462 = vrot.lane.b32.xlu0 %v330, 16
    %v463 = vpop.permute.xlu0 %462
    %464 = vrot.lane.b32.xlu0 %v331, 16
    %v465 = vpop.permute.xlu0 %464
    %466 = vrot.lane.b32.xlu0 %v332, 16
    %v467 = vpop.permute.xlu0 %466
    %468 = vrot.lane.b32.xlu0 %v333, 16
    %v469 = vpop.permute.xlu0 %468
    %v478 = vmul.f32 %v240, %v455
    %v479 = vmul.f32 %v245, %v457
    %v480 = vmul.f32 %v250, %v459
    %v481 = vmul.f32 %v255, %v461
    %v482 = vmul.f32 %v260, %v463
    %v483 = vmul.f32 %v265, %v465
    %v484 = vmul.f32 %v270, %v467
    %v485 = vmul.f32 %v275, %v469
    %v486 = vmul.f32 %v240, %v334
    %v487 = vmul.f32 %v245, %v335
    %v488 = vmul.f32 %v250, %v336
    %v489 = vmul.f32 %v255, %v337
    %v490 = vmul.f32 %v260, %v338
    %v491 = vmul.f32 %v265, %v339
    %v492 = vmul.f32 %v270, %v340
    %v493 = vmul.f32 %v275, %v341
    %502 = vrot.lane.b32.xlu0 %v486, 16
    %v503 = vpop.permute.xlu0 %502
    %504 = vrot.lane.b32.xlu0 %v487, 16
    %v505 = vpop.permute.xlu0 %504
    %506 = vrot.lane.b32.xlu0 %v488, 16
    %v507 = vpop.permute.xlu0 %506
    %508 = vrot.lane.b32.xlu0 %v489, 16
    %v509 = vpop.permute.xlu0 %508
    %510 = vrot.lane.b32.xlu0 %v490, 16
    %v511 = vpop.permute.xlu0 %510
    %512 = vrot.lane.b32.xlu0 %v491, 16
    %v513 = vpop.permute.xlu0 %512
    %514 = vrot.lane.b32.xlu0 %v492, 16
    %v515 = vpop.permute.xlu0 %514
    %516 = vrot.lane.b32.xlu0 %v493, 16
    %v517 = vpop.permute.xlu0 %516
    %v526 = vadd.f32 %v478, %v503
    %v527 = vadd.f32 %v479, %v505
    %v528 = vadd.f32 %v480, %v507
    %v529 = vadd.f32 %v481, %v509
    %v530 = vadd.f32 %v482, %v511
    %v531 = vadd.f32 %v483, %v513
    %v532 = vadd.f32 %v484, %v515
    %v533 = vadd.f32 %v485, %v517
    %542 = vrot.lane.b32.xlu0 %v342, 32
    %v543 = vpop.permute.xlu0 %542
    %544 = vrot.lane.b32.xlu0 %v343, 32
    %v545 = vpop.permute.xlu0 %544
    %546 = vrot.lane.b32.xlu0 %v344, 32
    %v547 = vpop.permute.xlu0 %546
    %548 = vrot.lane.b32.xlu0 %v345, 32
    %v549 = vpop.permute.xlu0 %548
    %550 = vrot.lane.b32.xlu0 %v346, 32
    %v551 = vpop.permute.xlu0 %550
    %552 = vrot.lane.b32.xlu0 %v347, 32
    %v553 = vpop.permute.xlu0 %552
    %554 = vrot.lane.b32.xlu0 %v348, 32
    %v555 = vpop.permute.xlu0 %554
    %556 = vrot.lane.b32.xlu0 %v349, 32
    %v557 = vpop.permute.xlu0 %556
    %v566 = vmul.f32 %v240, %v543
    %v567 = vmul.f32 %v245, %v545
    %v568 = vmul.f32 %v250, %v547
    %v569 = vmul.f32 %v255, %v549
    %v570 = vmul.f32 %v260, %v551
    %v571 = vmul.f32 %v265, %v553
    %v572 = vmul.f32 %v270, %v555
    %v573 = vmul.f32 %v275, %v557
    %582 = vrot.lane.b32.xlu0 %v350, 48
    %v583 = vpop.permute.xlu0 %582
    %584 = vrot.lane.b32.xlu0 %v351, 48
    %v585 = vpop.permute.xlu0 %584
    %586 = vrot.lane.b32.xlu0 %v352, 48
    %v587 = vpop.permute.xlu0 %586
    %588 = vrot.lane.b32.xlu0 %v353, 48
    %v589 = vpop.permute.xlu0 %588
    %590 = vrot.lane.b32.xlu0 %v354, 48
    %v591 = vpop.permute.xlu0 %590
    %592 = vrot.lane.b32.xlu0 %v355, 48
    %v593 = vpop.permute.xlu0 %592
    %594 = vrot.lane.b32.xlu0 %v356, 48
    %v595 = vpop.permute.xlu0 %594
    %596 = vrot.lane.b32.xlu0 %v357, 48
    %v597 = vpop.permute.xlu0 %596
    %v606 = vmul.f32 %v240, %v583
    %v607 = vmul.f32 %v245, %v585
    %v608 = vmul.f32 %v250, %v587
    %v609 = vmul.f32 %v255, %v589
    %v610 = vmul.f32 %v260, %v591
    %v611 = vmul.f32 %v265, %v593
    %v612 = vmul.f32 %v270, %v595
    %v613 = vmul.f32 %v275, %v597
    %622 = vrot.lane.b32.xlu0 %v606, 112
    %v623 = vpop.permute.xlu0 %622
    %624 = vrot.lane.b32.xlu0 %v607, 112
    %v625 = vpop.permute.xlu0 %624
    %626 = vrot.lane.b32.xlu0 %v608, 112
    %v627 = vpop.permute.xlu0 %626
    %628 = vrot.lane.b32.xlu0 %v609, 112
    %v629 = vpop.permute.xlu0 %628
    %630 = vrot.lane.b32.xlu0 %v610, 112
    %v631 = vpop.permute.xlu0 %630
    %632 = vrot.lane.b32.xlu0 %v611, 112
    %v633 = vpop.permute.xlu0 %632
    %634 = vrot.lane.b32.xlu0 %v612, 112
    %v635 = vpop.permute.xlu0 %634
    %636 = vrot.lane.b32.xlu0 %v613, 112
    %v637 = vpop.permute.xlu0 %636
    %v646 = vsub.f32 %v566, %v623
    %v647 = vsub.f32 %v567, %v625
    %v648 = vsub.f32 %v568, %v627
    %v649 = vsub.f32 %v569, %v629
    %v650 = vsub.f32 %v570, %v631
    %v651 = vsub.f32 %v571, %v633
    %v652 = vsub.f32 %v572, %v635
    %v653 = vsub.f32 %v573, %v637
    %654 = vrot.lane.b32.xlu0 %v342, 48
    %v655 = vpop.permute.xlu0 %654
    %656 = vrot.lane.b32.xlu0 %v343, 48
    %v657 = vpop.permute.xlu0 %656
    %658 = vrot.lane.b32.xlu0 %v344, 48
    %v659 = vpop.permute.xlu0 %658
    %660 = vrot.lane.b32.xlu0 %v345, 48
    %v661 = vpop.permute.xlu0 %660
    %662 = vrot.lane.b32.xlu0 %v346, 48
    %v663 = vpop.permute.xlu0 %662
    %664 = vrot.lane.b32.xlu0 %v347, 48
    %v665 = vpop.permute.xlu0 %664
    %666 = vrot.lane.b32.xlu0 %v348, 48
    %v667 = vpop.permute.xlu0 %666
    %668 = vrot.lane.b32.xlu0 %v349, 48
    %v669 = vpop.permute.xlu0 %668
    %v678 = vmul.f32 %v240, %v655
    %v679 = vmul.f32 %v245, %v657
    %v680 = vmul.f32 %v250, %v659
    %v681 = vmul.f32 %v255, %v661
    %v682 = vmul.f32 %v260, %v663
    %v683 = vmul.f32 %v265, %v665
    %v684 = vmul.f32 %v270, %v667
    %v685 = vmul.f32 %v275, %v669
    %686 = vrot.lane.b32.xlu0 %v350, 32
    %v687 = vpop.permute.xlu0 %686
    %688 = vrot.lane.b32.xlu0 %v351, 32
    %v689 = vpop.permute.xlu0 %688
    %690 = vrot.lane.b32.xlu0 %v352, 32
    %v691 = vpop.permute.xlu0 %690
    %692 = vrot.lane.b32.xlu0 %v353, 32
    %v693 = vpop.permute.xlu0 %692
    %694 = vrot.lane.b32.xlu0 %v354, 32
    %v695 = vpop.permute.xlu0 %694
    %696 = vrot.lane.b32.xlu0 %v355, 32
    %v697 = vpop.permute.xlu0 %696
    %698 = vrot.lane.b32.xlu0 %v356, 32
    %v699 = vpop.permute.xlu0 %698
    %700 = vrot.lane.b32.xlu0 %v357, 32
    %v701 = vpop.permute.xlu0 %700
    %v710 = vmul.f32 %v240, %v687
    %v711 = vmul.f32 %v245, %v689
    %v712 = vmul.f32 %v250, %v691
    %v713 = vmul.f32 %v255, %v693
    %v714 = vmul.f32 %v260, %v695
    %v715 = vmul.f32 %v265, %v697
    %v716 = vmul.f32 %v270, %v699
    %v717 = vmul.f32 %v275, %v701
    %726 = vrot.lane.b32.xlu0 %v710, 16
    %v727 = vpop.permute.xlu0 %726
    %728 = vrot.lane.b32.xlu0 %v711, 16
    %v729 = vpop.permute.xlu0 %728
    %730 = vrot.lane.b32.xlu0 %v712, 16
    %v731 = vpop.permute.xlu0 %730
    %732 = vrot.lane.b32.xlu0 %v713, 16
    %v733 = vpop.permute.xlu0 %732
    %734 = vrot.lane.b32.xlu0 %v714, 16
    %v735 = vpop.permute.xlu0 %734
    %736 = vrot.lane.b32.xlu0 %v715, 16
    %v737 = vpop.permute.xlu0 %736
    %738 = vrot.lane.b32.xlu0 %v716, 16
    %v739 = vpop.permute.xlu0 %738
    %740 = vrot.lane.b32.xlu0 %v717, 16
    %v741 = vpop.permute.xlu0 %740
    %v750 = vadd.f32 %v678, %v727
    %v751 = vadd.f32 %v679, %v729
    %v752 = vadd.f32 %v680, %v731
    %v753 = vadd.f32 %v681, %v733
    %v754 = vadd.f32 %v682, %v735
    %v755 = vadd.f32 %v683, %v737
    %v756 = vadd.f32 %v684, %v739
    %v757 = vadd.f32 %v685, %v741
    %766 = vrot.lane.b32.xlu0 %v526, 112
    %v767 = vpop.permute.xlu0 %766
    %768 = vrot.lane.b32.xlu0 %v527, 112
    %v769 = vpop.permute.xlu0 %768
    %770 = vrot.lane.b32.xlu0 %v528, 112
    %v771 = vpop.permute.xlu0 %770
    %772 = vrot.lane.b32.xlu0 %v529, 112
    %v773 = vpop.permute.xlu0 %772
    %774 = vrot.lane.b32.xlu0 %v530, 112
    %v775 = vpop.permute.xlu0 %774
    %776 = vrot.lane.b32.xlu0 %v531, 112
    %v777 = vpop.permute.xlu0 %776
    %778 = vrot.lane.b32.xlu0 %v532, 112
    %v779 = vpop.permute.xlu0 %778
    %780 = vrot.lane.b32.xlu0 %v533, 112
    %v781 = vpop.permute.xlu0 %780
    %790 = vrot.lane.b32.xlu0 %v750, 80
    %v791 = vpop.permute.xlu0 %790
    %792 = vrot.lane.b32.xlu0 %v751, 80
    %v793 = vpop.permute.xlu0 %792
    %794 = vrot.lane.b32.xlu0 %v752, 80
    %v795 = vpop.permute.xlu0 %794
    %796 = vrot.lane.b32.xlu0 %v753, 80
    %v797 = vpop.permute.xlu0 %796
    %798 = vrot.lane.b32.xlu0 %v754, 80
    %v799 = vpop.permute.xlu0 %798
    %800 = vrot.lane.b32.xlu0 %v755, 80
    %v801 = vpop.permute.xlu0 %800
    %802 = vrot.lane.b32.xlu0 %v756, 80
    %v803 = vpop.permute.xlu0 %802
    %804 = vrot.lane.b32.xlu0 %v757, 80
    %v805 = vpop.permute.xlu0 %804
    %v806 = vsel %vm148, %v767, 0
    %v808 = vsel %vm148, %v769, 0
    %v810 = vsel %vm148, %v771, 0
    %v812 = vsel %vm148, %v773, 0
    %v814 = vsel %vm148, %v775, 0
    %v816 = vsel %vm148, %v777, 0
    %v818 = vsel %vm148, %v779, 0
    %v820 = vsel %vm148, %v781, 0
    %v822 = vsel %vm148, %v791, 0
    %v824 = vsel %vm148, %v793, 0
    %v826 = vsel %vm148, %v795, 0
    %v828 = vsel %vm148, %v797, 0
    %v830 = vsel %vm148, %v799, 0
    %v832 = vsel %vm148, %v801, 0
    %v834 = vsel %vm148, %v803, 0
    %v836 = vsel %vm148, %v805, 0
    %838 = vmatprep.subr.mxu0 0.0
    %839 = vmatpush1.xpose.msra.mxu0 %v822
    %840 = vmatprep.subr.mxu0 0.0
    %841 = vmatpush1.xpose.msra.mxu0 %v824
    %842 = vmatprep.subr.mxu0 0.0
    %843 = vmatpush1.xpose.msra.mxu0 %v826
    %844 = vmatprep.subr.mxu0 0.0
    %845 = vmatpush1.xpose.msra.mxu0 %v828
    %846 = vmatprep.subr.mxu0 0.0
    %847 = vmatpush1.xpose.msra.mxu0 %v830
    %848 = vmatprep.subr.mxu0 0.0
    %849 = vmatpush1.xpose.msra.mxu0 %v832
    %850 = vmatprep.subr.mxu0 0.0
    %851 = vmatpush1.xpose.msra.mxu0 %v834
    %852 = vmatprep.subr.mxu0 0.0
    %853 = vmatpush1.xpose.msra.mxu0 %v836
    %854 = vmatprep.subr.mxu0 0.0
    %855 = vmatpush1.xpose.msra.mxu0 0.0
    %856 = vmatprep.subr.mxu0 0.0
    %857 = vmatpush1.xpose.msra.mxu0 0.0
    %858 = vmatprep.subr.mxu0 0.0
    %859 = vmatpush1.xpose.msra.mxu0 0.0
    %860 = vmatprep.subr.mxu0 0.0
    %861 = vmatpush1.xpose.msra.mxu0 0.0
    %862 = vmatprep.subr.mxu0 0.0
    %863 = vmatpush1.xpose.msra.mxu0 0.0
    %864 = vmatprep.subr.mxu0 0.0
    %865 = vmatpush1.xpose.msra.mxu0 0.0
    %866 = vmatprep.subr.mxu0 0.0
    %867 = vmatpush1.xpose.msra.mxu0 0.0
    %868 = vmatprep.subr.mxu0 0.0
    %869 = vmatpush1.xpose.msra.mxu0 0.0
    %870 = vmatprep.subr.mxu0 0.0
    %871 = vmatpush1.xpose.msra.mxu0 0.0
    %872 = vmatprep.subr.mxu0 0.0
    %873 = vmatpush1.xpose.msra.mxu0 0.0
    %874 = vmatprep.subr.mxu0 0.0
    %875 = vmatpush1.xpose.msra.mxu0 0.0
    %876 = vmatprep.subr.mxu0 0.0
    %877 = vmatpush1.xpose.msra.mxu0 0.0
    %878 = vmatprep.subr.mxu0 0.0
    %879 = vmatpush1.xpose.msra.mxu0 0.0
    %880 = vmatprep.subr.mxu0 0.0
    %881 = vmatpush1.xpose.msra.mxu0 0.0
    %882 = vmatprep.subr.mxu0 0.0
    %883 = vmatpush1.xpose.msra.mxu0 0.0
    %884 = vmatprep.subr.mxu0 0.0
    %885 = vmatpush1.xpose.msra.mxu0 0.0
    %886 = vmatprep.subr.mxu0 0.0
    %887 = vmatpush1.xpose.msra.mxu0 0.0
    %888 = vmatprep.subr.mxu0 0.0
    %889 = vmatpush1.xpose.msra.mxu0 0.0
    %890 = vmatprep.subr.mxu0 0.0
    %891 = vmatpush1.xpose.msra.mxu0 0.0
    %892 = vmatprep.subr.mxu0 0.0
    %893 = vmatpush1.xpose.msra.mxu0 0.0
    %894 = vmatprep.subr.mxu0 0.0
    %895 = vmatpush1.xpose.msra.mxu0 0.0
    %896 = vmatprep.subr.mxu0 0.0
    %897 = vmatpush1.xpose.msra.mxu0 0.0
    %898 = vmatprep.subr.mxu0 0.0
    %899 = vmatpush1.xpose.msra.mxu0 0.0
    %900 = vmatprep.subr.mxu0 0.0
    %901 = vmatpush1.xpose.msra.mxu0 0.0
    %902 = vmatprep.mubr.f32.mxu0 0.0
    %903 = vmatmul.mubr.f32.gmra.mrb[0].mxu0 %v806
    %v904 = vpop.f32.mrb[0].mxu0
    %v905 = vadd.f32 0.0, %v904
    %v906 = vpop.f32.mrb[0].mxu0
    %907 = vmatprep.mubr.f32.mxu0 0.0
    %908 = vmatmul.mubr.f32.gmra.mrb[0].mxu0 %v808
    %v909 = vpop.f32.mrb[0].mxu0
    %v910 = vadd.f32 0.0, %v909
    %v911 = vpop.f32.mrb[0].mxu0
    %912 = vmatprep.mubr.f32.mxu0 0.0
    %913 = vmatmul.mubr.f32.gmra.mrb[0].mxu0 %v810
    %v914 = vpop.f32.mrb[0].mxu0
    %v915 = vadd.f32 0.0, %v914
    %v916 = vpop.f32.mrb[0].mxu0
    %917 = vmatprep.mubr.f32.mxu0 0.0
    %918 = vmatmul.mubr.f32.gmra.mrb[0].mxu0 %v812
    %v919 = vpop.f32.mrb[0].mxu0
    %v920 = vadd.f32 0.0, %v919
    %v921 = vpop.f32.mrb[0].mxu0
    %922 = vmatprep.mubr.f32.mxu0 0.0
    %923 = vmatmul.mubr.f32.gmra.mrb[0].mxu0 %v814
    %v924 = vpop.f32.mrb[0].mxu0
    %v925 = vadd.f32 0.0, %v924
    %v926 = vpop.f32.mrb[0].mxu0
    %927 = vmatprep.mubr.f32.mxu0 0.0
    %928 = vmatmul.mubr.f32.gmra.mrb[0].mxu0 %v816
    %v929 = vpop.f32.mrb[0].mxu0
    %v930 = vadd.f32 0.0, %v929
    %v931 = vpop.f32.mrb[0].mxu0
    %932 = vmatprep.mubr.f32.mxu0 0.0
    %933 = vmatmul.mubr.f32.gmra.mrb[0].mxu0 %v818
    %v934 = vpop.f32.mrb[0].mxu0
    %v935 = vadd.f32 0.0, %v934
    %v936 = vpop.f32.mrb[0].mxu0
    %937 = vmatprep.mubr.f32.mxu0 0.0
    %938 = vmatmul.mubr.f32.gmra.mrb[0].mxu0 %v820
    %v939 = vpop.f32.mrb[0].mxu0
    %v940 = vadd.f32 0.0, %v939
    %v941 = vpop.f32.mrb[0].mxu0
    %942 = vdwg.mxu0
    %951 = vrot.lane.b32.xlu0 %v646, 96
    %v952 = vpop.permute.xlu0 %951
    %953 = vrot.lane.b32.xlu0 %v647, 96
    %v954 = vpop.permute.xlu0 %953
    %955 = vrot.lane.b32.xlu0 %v648, 96
    %v956 = vpop.permute.xlu0 %955
    %957 = vrot.lane.b32.xlu0 %v649, 96
    %v958 = vpop.permute.xlu0 %957
    %959 = vrot.lane.b32.xlu0 %v650, 96
    %v960 = vpop.permute.xlu0 %959
    %961 = vrot.lane.b32.xlu0 %v651, 96
    %v962 = vpop.permute.xlu0 %961
    %963 = vrot.lane.b32.xlu0 %v652, 96
    %v964 = vpop.permute.xlu0 %963
    %965 = vrot.lane.b32.xlu0 %v653, 96
    %v966 = vpop.permute.xlu0 %965
    %v968 = vsel %vm148, %v438, 0
    %v971 = vsel %vm148, %v439, 0
    %v974 = vsel %vm148, %v440, 0
    %v977 = vsel %vm148, %v441, 0
    %v980 = vsel %vm148, %v442, 0
    %v983 = vsel %vm148, %v443, 0
    %v986 = vsel %vm148, %v444, 0
    %v989 = vsel %vm148, %v445, 0
    %v991 = vsel %vm148, %v952, 0
    %v993 = vsel %vm148, %v954, 0
    %v995 = vsel %vm148, %v956, 0
    %v997 = vsel %vm148, %v958, 0
    %v999 = vsel %vm148, %v960, 0
    %v1001 = vsel %vm148, %v962, 0
    %v1003 = vsel %vm148, %v964, 0
    %v1005 = vsel %vm148, %v966, 0
    %1007 = vmatprep.subr.mxu0 0.0
    %1008 = vmatpush1.xpose.msra.mxu0 %v991
    %1009 = vmatprep.subr.mxu0 0.0
    %1010 = vmatpush1.xpose.msra.mxu0 %v993
    %1011 = vmatprep.subr.mxu0 0.0
    %1012 = vmatpush1.xpose.msra.mxu0 %v995
    %1013 = vmatprep.subr.mxu0 0.0
    %1014 = vmatpush1.xpose.msra.mxu0 %v997
    %1015 = vmatprep.subr.mxu0 0.0
    %1016 = vmatpush1.xpose.msra.mxu0 %v999
    %1017 = vmatprep.subr.mxu0 0.0
    %1018 = vmatpush1.xpose.msra.mxu0 %v1001
    %1019 = vmatprep.subr.mxu0 0.0
    %1020 = vmatpush1.xpose.msra.mxu0 %v1003
    %1021 = vmatprep.subr.mxu0 0.0
    %1022 = vmatpush1.xpose.msra.mxu0 %v1005
    %1023 = vmatprep.subr.mxu0 0.0
    %1024 = vmatpush1.xpose.msra.mxu0 0.0
    %1025 = vmatprep.subr.mxu0 0.0
    %1026 = vmatpush1.xpose.msra.mxu0 0.0
    %1027 = vmatprep.subr.mxu0 0.0
    %1028 = vmatpush1.xpose.msra.mxu0 0.0
    %1029 = vmatprep.subr.mxu0 0.0
    %1030 = vmatpush1.xpose.msra.mxu0 0.0
    %1031 = vmatprep.subr.mxu0 0.0
    %1032 = vmatpush1.xpose.msra.mxu0 0.0
    %1033 = vmatprep.subr.mxu0 0.0
    %1034 = vmatpush1.xpose.msra.mxu0 0.0
    %1035 = vmatprep.subr.mxu0 0.0
    %1036 = vmatpush1.xpose.msra.mxu0 0.0
    %1037 = vmatprep.subr.mxu0 0.0
    %1038 = vmatpush1.xpose.msra.mxu0 0.0
    %1039 = vmatprep.subr.mxu0 0.0
    %1040 = vmatpush1.xpose.msra.mxu0 0.0
    %1041 = vmatprep.subr.mxu0 0.0
    %1042 = vmatpush1.xpose.msra.mxu0 0.0
    %1043 = vmatprep.subr.mxu0 0.0
    %1044 = vmatpush1.xpose.msra.mxu0 0.0
    %1045 = vmatprep.subr.mxu0 0.0
    %1046 = vmatpush1.xpose.msra.mxu0 0.0
    %1047 = vmatprep.subr.mxu0 0.0
    %1048 = vmatpush1.xpose.msra.mxu0 0.0
    %1049 = vmatprep.subr.mxu0 0.0
    %1050 = vmatpush1.xpose.msra.mxu0 0.0
    %1051 = vmatprep.subr.mxu0 0.0
    %1052 = vmatpush1.xpose.msra.mxu0 0.0
    %1053 = vmatprep.subr.mxu0 0.0
    %1054 = vmatpush1.xpose.msra.mxu0 0.0
    %1055 = vmatprep.subr.mxu0 0.0
    %1056 = vmatpush1.xpose.msra.mxu0 0.0
    %1057 = vmatprep.subr.mxu0 0.0
    %1058 = vmatpush1.xpose.msra.mxu0 0.0
    %1059 = vmatprep.subr.mxu0 0.0
    %1060 = vmatpush1.xpose.msra.mxu0 0.0
    %1061 = vmatprep.subr.mxu0 0.0
    %1062 = vmatpush1.xpose.msra.mxu0 0.0
    %1063 = vmatprep.subr.mxu0 0.0
    %1064 = vmatpush1.xpose.msra.mxu0 0.0
    %1065 = vmatprep.subr.mxu0 0.0
    %1066 = vmatpush1.xpose.msra.mxu0 0.0
    %1067 = vmatprep.subr.mxu0 0.0
    %1068 = vmatpush1.xpose.msra.mxu0 0.0
    %1069 = vmatprep.subr.mxu0 0.0
    %1070 = vmatpush1.xpose.msra.mxu0 0.0
    %1071 = vmatprep.mubr.f32.mxu0 0.0
    %1072 = vmatmul.mubr.f32.gmra.mrb[0].mxu0 %v968
    %v1073 = vpop.f32.mrb[0].mxu0
    %v1074 = vadd.f32 %v905, %v1073
    %v1075 = vpop.f32.mrb[0].mxu0
    %1076 = vmatprep.mubr.f32.mxu0 0.0
    %1077 = vmatmul.mubr.f32.gmra.mrb[0].mxu0 %v971
    %v1078 = vpop.f32.mrb[0].mxu0
    %v1079 = vadd.f32 %v910, %v1078
    %v1080 = vpop.f32.mrb[0].mxu0
    %1081 = vmatprep.mubr.f32.mxu0 0.0
    %1082 = vmatmul.mubr.f32.gmra.mrb[0].mxu0 %v974
    %v1083 = vpop.f32.mrb[0].mxu0
    %v1084 = vadd.f32 %v915, %v1083
    %v1085 = vpop.f32.mrb[0].mxu0
    %1086 = vmatprep.mubr.f32.mxu0 0.0
    %1087 = vmatmul.mubr.f32.gmra.mrb[0].mxu0 %v977
    %v1088 = vpop.f32.mrb[0].mxu0
    %v1089 = vadd.f32 %v920, %v1088
    %v1090 = vpop.f32.mrb[0].mxu0
    %1091 = vmatprep.mubr.f32.mxu0 0.0
    %1092 = vmatmul.mubr.f32.gmra.mrb[0].mxu0 %v980
    %v1093 = vpop.f32.mrb[0].mxu0
    %v1094 = vadd.f32 %v925, %v1093
    %v1095 = vpop.f32.mrb[0].mxu0
    %1096 = vmatprep.mubr.f32.mxu0 0.0
    %1097 = vmatmul.mubr.f32.gmra.mrb[0].mxu0 %v983
    %v1098 = vpop.f32.mrb[0].mxu0
    %v1099 = vadd.f32 %v930, %v1098
    %v1100 = vpop.f32.mrb[0].mxu0
    %1101 = vmatprep.mubr.f32.mxu0 0.0
    %1102 = vmatmul.mubr.f32.gmra.mrb[0].mxu0 %v986
    %v1103 = vpop.f32.mrb[0].mxu0
    %v1104 = vadd.f32 %v935, %v1103
    %v1105 = vpop.f32.mrb[0].mxu0
    %1106 = vmatprep.mubr.f32.mxu0 0.0
    %1107 = vmatmul.mubr.f32.gmra.mrb[0].mxu0 %v989
    %v1108 = vpop.f32.mrb[0].mxu0
    %v1109 = vadd.f32 %v940, %v1108
    %v1110 = vpop.f32.mrb[0].mxu0
    %1111 = vdwg.mxu0
    %v1112 = vld [vmem:[%s12] sm:$0xff]
    %v1113 = vld [vmem:[%s12 + $0x8] sm:$0xff]
    %v1114 = vld [vmem:[%s12 + $0x10] sm:$0xff]
    %v1115 = vld [vmem:[%s12 + $0x18] sm:$0xff]
    %v1116 = vld [vmem:[%s12 + $0x20] sm:$0xff]
    %v1117 = vld [vmem:[%s12 + $0x28] sm:$0xff]
    %v1118 = vld [vmem:[%s12 + $0x30] sm:$0xff]
    %v1119 = vld [vmem:[%s12 + $0x38] sm:$0xff]
    %v1120 = vadd.f32 %v1074, %v1112
    %v1121 = vadd.f32 %v1079, %v1113
    %v1122 = vadd.f32 %v1084, %v1114
    %v1123 = vadd.f32 %v1089, %v1115
    %v1124 = vadd.f32 %v1094, %v1116
    %v1125 = vadd.f32 %v1099, %v1117
    %v1126 = vadd.f32 %v1104, %v1118
    %v1127 = vadd.f32 %v1109, %v1119
    %vm1128 = vcmask 523264
    %v1129 = vsel %vm1128, %v1120, -inf
    %1130 = vmax.xlane.f32.xlu0 %v1129
    %v1131 = vpop.xlane.xlu0 %1130
    %v1132 = vsel %vm1128, %v1121, -inf
    %1133 = vmax.xlane.f32.xlu0 %v1132
    %v1134 = vpop.xlane.xlu0 %1133
    %v1135 = vsel %vm1128, %v1122, -inf
    %1136 = vmax.xlane.f32.xlu0 %v1135
    %v1137 = vpop.xlane.xlu0 %1136
    %v1138 = vsel %vm1128, %v1123, -inf
    %1139 = vmax.xlane.f32.xlu0 %v1138
    %v1140 = vpop.xlane.xlu0 %1139
    %v1141 = vsel %vm1128, %v1124, -inf
    %1142 = vmax.xlane.f32.xlu0 %v1141
    %v1143 = vpop.xlane.xlu0 %1142
    %v1144 = vsel %vm1128, %v1125, -inf
    %1145 = vmax.xlane.f32.xlu0 %v1144
    %v1146 = vpop.xlane.xlu0 %1145
    %v1147 = vsel %vm1128, %v1126, -inf
    %1148 = vmax.xlane.f32.xlu0 %v1147
    %v1149 = vpop.xlane.xlu0 %1148
    %v1150 = vsel %vm1128, %v1127, -inf
    %1151 = vmax.xlane.f32.xlu0 %v1150
    %v1152 = vpop.xlane.xlu0 %1151
    %v1153 = vsub.f32 %v1120, %v1131
    %v1154 = vsub.f32 %v1121, %v1134
    %v1155 = vsub.f32 %v1122, %v1137
    %v1156 = vsub.f32 %v1123, %v1140
    %v1157 = vsub.f32 %v1124, %v1143
    %v1158 = vsub.f32 %v1125, %v1146
    %v1159 = vsub.f32 %v1126, %v1149
    %v1160 = vsub.f32 %v1127, %v1152
    %v1161 = vmul.f32 %v1153, 1.442695
    %v1162 = vpow.pop %v1161
    %v1163 = vmul.f32 %v1154, 1.442695
    %v1164 = vpow.pop %v1163
    %v1165 = vmul.f32 %v1155, 1.442695
    %v1166 = vpow.pop %v1165
    %v1167 = vmul.f32 %v1156, 1.442695
    %v1168 = vpow.pop %v1167
    %v1169 = vmul.f32 %v1157, 1.442695
    %v1170 = vpow.pop %v1169
    %v1171 = vmul.f32 %v1158, 1.442695
    %v1172 = vpow.pop %v1171
    %v1173 = vmul.f32 %v1159, 1.442695
    %v1174 = vpow.pop %v1173
    %v1175 = vmul.f32 %v1160, 1.442695
    %v1176 = vpow.pop %v1175
    %v1177 = vsel %vm1128, %v1162, 0.0
    %1178 = vadd.xlane.f32.xlu0 %v1177
    %v1179 = vpop.xlane.xlu0 %1178
    %v1180 = vsel %vm1128, %v1164, 0.0
    %1181 = vadd.xlane.f32.xlu0 %v1180
    %v1182 = vpop.xlane.xlu0 %1181
    %v1183 = vsel %vm1128, %v1166, 0.0
    %1184 = vadd.xlane.f32.xlu0 %v1183
    %v1185 = vpop.xlane.xlu0 %1184
    %v1186 = vsel %vm1128, %v1168, 0.0
    %1187 = vadd.xlane.f32.xlu0 %v1186
    %v1188 = vpop.xlane.xlu0 %1187
    %v1189 = vsel %vm1128, %v1170, 0.0
    %1190 = vadd.xlane.f32.xlu0 %v1189
    %v1191 = vpop.xlane.xlu0 %1190
    %v1192 = vsel %vm1128, %v1172, 0.0
    %1193 = vadd.xlane.f32.xlu0 %v1192
    %v1194 = vpop.xlane.xlu0 %1193
    %v1195 = vsel %vm1128, %v1174, 0.0
    %1196 = vadd.xlane.f32.xlu0 %v1195
    %v1197 = vpop.xlane.xlu0 %1196
    %v1198 = vsel %vm1128, %v1176, 0.0
    %1199 = vadd.xlane.f32.xlu0 %v1198
    %v1200 = vpop.xlane.xlu0 %1199
    %1209 = vrot.lane.b32.xlu0 %v318, 64
    %v1210 = vpop.permute.xlu0 %1209
    %1211 = vrot.lane.b32.xlu0 %v319, 64
    %v1212 = vpop.permute.xlu0 %1211
    %1213 = vrot.lane.b32.xlu0 %v320, 64
    %v1214 = vpop.permute.xlu0 %1213
    %1215 = vrot.lane.b32.xlu0 %v321, 64
    %v1216 = vpop.permute.xlu0 %1215
    %1217 = vrot.lane.b32.xlu0 %v322, 64
    %v1218 = vpop.permute.xlu0 %1217
    %1219 = vrot.lane.b32.xlu0 %v323, 64
    %v1220 = vpop.permute.xlu0 %1219
    %1221 = vrot.lane.b32.xlu0 %v324, 64
    %v1222 = vpop.permute.xlu0 %1221
    %1223 = vrot.lane.b32.xlu0 %v325, 64
    %v1224 = vpop.permute.xlu0 %1223
    %v1234 = vsel %vm1128, %v1162, 0
    %v1237 = vsel %vm1128, %v1164, 0
    %v1240 = vsel %vm1128, %v1166, 0
    %v1243 = vsel %vm1128, %v1168, 0
    %v1246 = vsel %vm1128, %v1170, 0
    %v1249 = vsel %vm1128, %v1172, 0
    %v1252 = vsel %vm1128, %v1174, 0
    %v1255 = vsel %vm1128, %v1176, 0
    %1257 = vmatprep.subr.mxu0 0.0
    %1258 = vmatpush1.msra.mxu0 %v1210
    %1259 = vmatprep.subr.mxu0 0.0
    %1260 = vmatpush1.msra.mxu0 %v1212
    %1261 = vmatprep.subr.mxu0 0.0
    %1262 = vmatpush1.msra.mxu0 %v1214
    %1263 = vmatprep.subr.mxu0 0.0
    %1264 = vmatpush1.msra.mxu0 %v1216
    %1265 = vmatprep.subr.mxu0 0.0
    %1266 = vmatpush1.msra.mxu0 %v1218
    %1267 = vmatprep.subr.mxu0 0.0
    %1268 = vmatpush1.msra.mxu0 %v1220
    %1269 = vmatprep.subr.mxu0 0.0
    %1270 = vmatpush1.msra.mxu0 %v1222
    %1271 = vmatprep.subr.mxu0 0.0
    %1272 = vmatpush1.msra.mxu0 %v1224
    %1273 = vmatprep.subr.mxu0 0.0
    %1274 = vmatpush1.msra.mxu0 0.0
    %1275 = vmatprep.subr.mxu0 0.0
    %1276 = vmatpush1.msra.mxu0 0.0
    %1277 = vmatprep.subr.mxu0 0.0
    %1278 = vmatpush1.msra.mxu0 0.0
    %1279 = vmatprep.subr.mxu0 0.0
    %1280 = vmatpush1.msra.mxu0 0.0
    %1281 = vmatprep.subr.mxu0 0.0
    %1282 = vmatpush1.msra.mxu0 0.0
    %1283 = vmatprep.subr.mxu0 0.0
    %1284 = vmatpush1.msra.mxu0 0.0
    %1285 = vmatprep.subr.mxu0 0.0
    %1286 = vmatpush1.msra.mxu0 0.0
    %1287 = vmatprep.subr.mxu0 0.0
    %1288 = vmatpush1.msra.mxu0 0.0
    %1289 = vmatprep.subr.mxu0 0.0
    %1290 = vmatpush1.msra.mxu0 0.0
    %1291 = vmatprep.subr.mxu0 0.0
    %1292 = vmatpush1.msra.mxu0 0.0
    %1293 = vmatprep.subr.mxu0 0.0
    %1294 = vmatpush1.msra.mxu0 0.0
    %1295 = vmatprep.subr.mxu0 0.0
    %1296 = vmatpush1.msra.mxu0 0.0
    %1297 = vmatprep.subr.mxu0 0.0
    %1298 = vmatpush1.msra.mxu0 0.0
    %1299 = vmatprep.subr.mxu0 0.0
    %1300 = vmatpush1.msra.mxu0 0.0
    %1301 = vmatprep.subr.mxu0 0.0
    %1302 = vmatpush1.msra.mxu0 0.0
    %1303 = vmatprep.subr.mxu0 0.0
    %1304 = vmatpush1.msra.mxu0 0.0
    %1305 = vmatprep.subr.mxu0 0.0
    %1306 = vmatpush1.msra.mxu0 0.0
    %1307 = vmatprep.subr.mxu0 0.0
    %1308 = vmatpush1.msra.mxu0 0.0
    %1309 = vmatprep.subr.mxu0 0.0
    %1310 = vmatpush1.msra.mxu0 0.0
    %1311 = vmatprep.subr.mxu0 0.0
    %1312 = vmatpush1.msra.mxu0 0.0
    %1313 = vmatprep.subr.mxu0 0.0
    %1314 = vmatpush1.msra.mxu0 0.0
    %1315 = vmatprep.subr.mxu0 0.0
    %1316 = vmatpush1.msra.mxu0 0.0
    %1317 = vmatprep.subr.mxu0 0.0
    %1318 = vmatpush1.msra.mxu0 0.0
    %1319 = vmatprep.subr.mxu0 0.0
    %1320 = vmatpush1.msra.mxu0 0.0
    %1321 = vmatprep.mubr.f32.mxu0 0.0
    %1322 = vmatmul.mubr.f32.gmra.mrb[0].mxu0 %v1234
    %v1323 = vpop.f32.mrb[0].mxu0
    %v1324 = vadd.f32 0.0, %v1323
    %v1325 = vpop.f32.mrb[0].mxu0
    %1326 = vmatprep.mubr.f32.mxu0 0.0
    %1327 = vmatmul.mubr.f32.gmra.mrb[0].mxu0 %v1237
    %v1328 = vpop.f32.mrb[0].mxu0
    %v1329 = vadd.f32 0.0, %v1328
    %v1330 = vpop.f32.mrb[0].mxu0
    %1331 = vmatprep.mubr.f32.mxu0 0.0
    %1332 = vmatmul.mubr.f32.gmra.mrb[0].mxu0 %v1240
    %v1333 = vpop.f32.mrb[0].mxu0
    %v1334 = vadd.f32 0.0, %v1333
    %v1335 = vpop.f32.mrb[0].mxu0
    %1336 = vmatprep.mubr.f32.mxu0 0.0
    %1337 = vmatmul.mubr.f32.gmra.mrb[0].mxu0 %v1243
    %v1338 = vpop.f32.mrb[0].mxu0
    %v1339 = vadd.f32 0.0, %v1338
    %v1340 = vpop.f32.mrb[0].mxu0
    %1341 = vmatprep.mubr.f32.mxu0 0.0
    %1342 = vmatmul.mubr.f32.gmra.mrb[0].mxu0 %v1246
    %v1343 = vpop.f32.mrb[0].mxu0
    %v1344 = vadd.f32 0.0, %v1343
    %v1345 = vpop.f32.mrb[0].mxu0
    %1346 = vmatprep.mubr.f32.mxu0 0.0
    %1347 = vmatmul.mubr.f32.gmra.mrb[0].mxu0 %v1249
    %v1348 = vpop.f32.mrb[0].mxu0
    %v1349 = vadd.f32 0.0, %v1348
    %v1350 = vpop.f32.mrb[0].mxu0
    %1351 = vmatprep.mubr.f32.mxu0 0.0
    %1352 = vmatmul.mubr.f32.gmra.mrb[0].mxu0 %v1252
    %v1353 = vpop.f32.mrb[0].mxu0
    %v1354 = vadd.f32 0.0, %v1353
    %v1355 = vpop.f32.mrb[0].mxu0
    %1356 = vmatprep.mubr.f32.mxu0 0.0
    %1357 = vmatmul.mubr.f32.gmra.mrb[0].mxu0 %v1255
    %v1358 = vpop.f32.mrb[0].mxu0
    %v1359 = vadd.f32 0.0, %v1358
    %v1360 = vpop.f32.mrb[0].mxu0
    %1361 = vdwg.mxu0
    %v1362 = vrcp.pop %v1179
    %v1363 = vrcp.pop %v1182
    %v1364 = vrcp.pop %v1185
    %v1365 = vrcp.pop %v1188
    %v1366 = vrcp.pop %v1191
    %v1367 = vrcp.pop %v1194
    %v1368 = vrcp.pop %v1197
    %v1369 = vrcp.pop %v1200
    %v1370 = vmul.f32 %v1324, %v1362
    %v1371 = vmul.f32 %v1329, %v1363
    %v1372 = vmul.f32 %v1334, %v1364
    %v1373 = vmul.f32 %v1339, %v1365
    %v1374 = vmul.f32 %v1344, %v1366
    %v1375 = vmul.f32 %v1349, %v1367
    %v1376 = vmul.f32 %v1354, %v1368
    %v1377 = vmul.f32 %v1359, %v1369
    %v1378 = vld [vmem:[%s10] sm:$0xff]
    %v1379 = vld [vmem:[%s10 + $0x8] sm:$0xff]
    %v1381 = vsel %vm1128, %v1378, 0
    %v1384 = vsel %vm1128, %v1379, 0
    %1386 = vmatprep.subr.mxu0 0.0
    %1387 = vmatpush1.msra.mxu0 %v1370
    %1388 = vmatprep.subr.mxu0 0.0
    %1389 = vmatpush1.msra.mxu0 %v1371
    %1390 = vmatprep.subr.mxu0 0.0
    %1391 = vmatpush1.msra.mxu0 %v1372
    %1392 = vmatprep.subr.mxu0 0.0
    %1393 = vmatpush1.msra.mxu0 %v1373
    %1394 = vmatprep.subr.mxu0 0.0
    %1395 = vmatpush1.msra.mxu0 %v1374
    %1396 = vmatprep.subr.mxu0 0.0
    %1397 = vmatpush1.msra.mxu0 %v1375
    %1398 = vmatprep.subr.mxu0 0.0
    %1399 = vmatpush1.msra.mxu0 %v1376
    %1400 = vmatprep.subr.mxu0 0.0
    %1401 = vmatpush1.msra.mxu0 %v1377
    %1402 = vmatprep.subr.mxu0 0.0
    %1403 = vmatpush1.msra.mxu0 0.0
    %1404 = vmatprep.subr.mxu0 0.0
    %1405 = vmatpush1.msra.mxu0 0.0
    %1406 = vmatprep.subr.mxu0 0.0
    %1407 = vmatpush1.msra.mxu0 0.0
    %1408 = vmatprep.subr.mxu0 0.0
    %1409 = vmatpush1.msra.mxu0 0.0
    %1410 = vmatprep.subr.mxu0 0.0
    %1411 = vmatpush1.msra.mxu0 0.0
    %1412 = vmatprep.subr.mxu0 0.0
    %1413 = vmatpush1.msra.mxu0 0.0
    %1414 = vmatprep.subr.mxu0 0.0
    %1415 = vmatpush1.msra.mxu0 0.0
    %1416 = vmatprep.subr.mxu0 0.0
    %1417 = vmatpush1.msra.mxu0 0.0
    %1418 = vmatprep.subr.mxu0 0.0
    %1419 = vmatpush1.msra.mxu0 0.0
    %1420 = vmatprep.subr.mxu0 0.0
    %1421 = vmatpush1.msra.mxu0 0.0
    %1422 = vmatprep.subr.mxu0 0.0
    %1423 = vmatpush1.msra.mxu0 0.0
    %1424 = vmatprep.subr.mxu0 0.0
    %1425 = vmatpush1.msra.mxu0 0.0
    %1426 = vmatprep.subr.mxu0 0.0
    %1427 = vmatpush1.msra.mxu0 0.0
    %1428 = vmatprep.subr.mxu0 0.0
    %1429 = vmatpush1.msra.mxu0 0.0
    %1430 = vmatprep.subr.mxu0 0.0
    %1431 = vmatpush1.msra.mxu0 0.0
    %1432 = vmatprep.subr.mxu0 0.0
    %1433 = vmatpush1.msra.mxu0 0.0
    %1434 = vmatprep.subr.mxu0 0.0
    %1435 = vmatpush1.msra.mxu0 0.0
    %1436 = vmatprep.subr.mxu0 0.0
    %1437 = vmatpush1.msra.mxu0 0.0
    %1438 = vmatprep.subr.mxu0 0.0
    %1439 = vmatpush1.msra.mxu0 0.0
    %1440 = vmatprep.subr.mxu0 0.0
    %1441 = vmatpush1.msra.mxu0 0.0
    %1442 = vmatprep.subr.mxu0 0.0
    %1443 = vmatpush1.msra.mxu0 0.0
    %1444 = vmatprep.subr.mxu0 0.0
    %1445 = vmatpush1.msra.mxu0 0.0
    %1446 = vmatprep.subr.mxu0 0.0
    %1447 = vmatpush1.msra.mxu0 0.0
    %1448 = vmatprep.subr.mxu0 0.0
    %1449 = vmatpush1.msra.mxu0 0.0
    %1450 = vmatprep.mubr.f32.mxu0 0.0
    %1451 = vmatmul.mubr.f32.gmra.mrb[0].mxu0 %v1381
    %v1452 = vpop.f32.mrb[0].mxu0
    %v1453 = vadd.f32 0.0, %v1452
    %v1454 = vpop.f32.mrb[0].mxu0
    %1455 = vmatprep.mubr.f32.mxu0 0.0
    %1456 = vmatmul.mubr.f32.gmra.mrb[0].mxu0 %v1384
    %v1457 = vpop.f32.mrb[0].mxu0
    %v1458 = vadd.f32 0.0, %v1457
    %v1459 = vpop.f32.mrb[0].mxu0
    %1460 = vdwg.mxu0
    %v1461 = vxor.u32 %v1453, 2147483648
    %v1462 = vxor.u32 %v1458, 2147483648
    %v1463 = vmul.f32 %v1461, 1.442695
    %v1464 = vpow.pop %v1463
    %v1465 = vmul.f32 %v1462, 1.442695
    %v1466 = vpow.pop %v1465
    %v1467 = vadd.f32 %v1464, 1.0
    %v1468 = vadd.f32 %v1466, 1.0
    %v1469 = vrcp.pop %v1467
    %v1470 = vmul.f32 1.0, %v1469
    %v1471 = vrcp.pop %v1468
    %v1472 = vmul.f32 1.0, %v1471
    %v1473 = vmul.f32 %v1453, %v1470
    %v1474 = vmul.f32 %v1458, %v1472
    %v1475 = vld [vmem:[%s3] sm:$0xff]
    %v1476 = vld [vmem:[%s3 + $0x8] sm:$0xff]
    %v1477 = vld [vmem:[%s3 + $0x10] sm:$0xff]
    %v1478 = vld [vmem:[%s3 + $0x18] sm:$0xff]
    %v1479 = vld [vmem:[%s4] sm:$0x1]
    %v1481 = vlaneseq
    %v1482 = vshrl.u32 %v1481, 7
    %v1483 = vsub.s32 0, %v1482
    %v1484 = vrot.slane %v1479, %v1483
    %v1487 = vsel %vm58, %v1473, 0
    %v1490 = vsel %vm58, %v1474, 0
    %1492 = vmatprep.subr.mxu0 0.0
    %1493 = vmatpush1.msra.mxu0 %v1475
    %1494 = vmatprep.subr.mxu0 0.0
    %1495 = vmatpush1.msra.mxu0 %v1476
    %1496 = vmatprep.subr.mxu0 0.0
    %1497 = vmatpush1.msra.mxu0 %v1477
    %1498 = vmatprep.subr.mxu0 0.0
    %1499 = vmatpush1.msra.mxu0 %v1478
    %1500 = vmatprep.subr.mxu0 0.0
    %1501 = vmatpush1.msra.mxu0 0.0
    %1502 = vmatprep.subr.mxu0 0.0
    %1503 = vmatpush1.msra.mxu0 0.0
    %1504 = vmatprep.subr.mxu0 0.0
    %1505 = vmatpush1.msra.mxu0 0.0
    %1506 = vmatprep.subr.mxu0 0.0
    %1507 = vmatpush1.msra.mxu0 0.0
    %1508 = vmatprep.subr.mxu0 0.0
    %1509 = vmatpush1.msra.mxu0 0.0
    %1510 = vmatprep.subr.mxu0 0.0
    %1511 = vmatpush1.msra.mxu0 0.0
    %1512 = vmatprep.subr.mxu0 0.0
    %1513 = vmatpush1.msra.mxu0 0.0
    %1514 = vmatprep.subr.mxu0 0.0
    %1515 = vmatpush1.msra.mxu0 0.0
    %1516 = vmatprep.subr.mxu0 0.0
    %1517 = vmatpush1.msra.mxu0 0.0
    %1518 = vmatprep.subr.mxu0 0.0
    %1519 = vmatpush1.msra.mxu0 0.0
    %1520 = vmatprep.subr.mxu0 0.0
    %1521 = vmatpush1.msra.mxu0 0.0
    %1522 = vmatprep.subr.mxu0 0.0
    %1523 = vmatpush1.msra.mxu0 0.0
    %1524 = vmatprep.subr.mxu0 0.0
    %1525 = vmatpush1.msra.mxu0 0.0
    %1526 = vmatprep.subr.mxu0 0.0
    %1527 = vmatpush1.msra.mxu0 0.0
    %1528 = vmatprep.subr.mxu0 0.0
    %1529 = vmatpush1.msra.mxu0 0.0
    %1530 = vmatprep.subr.mxu0 0.0
    %1531 = vmatpush1.msra.mxu0 0.0
    %1532 = vmatprep.subr.mxu0 0.0
    %1533 = vmatpush1.msra.mxu0 0.0
    %1534 = vmatprep.subr.mxu0 0.0
    %1535 = vmatpush1.msra.mxu0 0.0
    %1536 = vmatprep.subr.mxu0 0.0
    %1537 = vmatpush1.msra.mxu0 0.0
    %1538 = vmatprep.subr.mxu0 0.0
    %1539 = vmatpush1.msra.mxu0 0.0
    %1540 = vmatprep.subr.mxu0 0.0
    %1541 = vmatpush1.msra.mxu0 0.0
    %1542 = vmatprep.subr.mxu0 0.0
    %1543 = vmatpush1.msra.mxu0 0.0
    %1544 = vmatprep.subr.mxu0 0.0
    %1545 = vmatpush1.msra.mxu0 0.0
    %1546 = vmatprep.subr.mxu0 0.0
    %1547 = vmatpush1.msra.mxu0 0.0
    %1548 = vmatprep.subr.mxu0 0.0
    %1549 = vmatpush1.msra.mxu0 0.0
    %1550 = vmatprep.subr.mxu0 0.0
    %1551 = vmatpush1.msra.mxu0 0.0
    %1552 = vmatprep.subr.mxu0 0.0
    %1553 = vmatpush1.msra.mxu0 0.0
    %1554 = vmatprep.subr.mxu0 0.0
    %1555 = vmatpush1.msra.mxu0 0.0
    %1556 = vmatprep.mubr.f32.mxu0 0.0
    %1557 = vmatmul.mubr.f32.gmra.mrb[0].mxu0 %v1487
    %v1558 = vpop.f32.mrb[0].mxu0
    %v1559 = vadd.f32 %v1484, %v1558
    %v1560 = vpop.f32.mrb[0].mxu0
    %1561 = vmatprep.mubr.f32.mxu0 0.0
    %1562 = vmatmul.mubr.f32.gmra.mrb[0].mxu0 %v1490
    %v1563 = vpop.f32.mrb[0].mxu0
    %v1564 = vadd.f32 %v1484, %v1563
    %v1565 = vpop.f32.mrb[0].mxu0
    %1566 = vdwg.mxu0
    %1567 = vst.msk [vmem:[#allocation2] sm:$0xff] %vm58, %v1559
    %1568 = vst.msk [vmem:[#allocation2 + $0x8] sm:$0xff] %vm58, %v1564
    // Predicated region
    $region54: #{tpu_custom_call.1} parent=1 // pred_check
      _
    $region55: #{tpu_custom_call.1} parent=1 // pred_check_branch
      %1570 = sbr.rel (0) target = $region57
    $region56: #{tpu_custom_call.1} parent=1 // pred_region
      %s1572 = ssub.s32 256, 256
      %1573 = vsyncadd [#allocation3], %s1572
      %s1574 = sshll.u32 [#allocation2], 4
      %s1575 = int_to_ptr.vmem [resolvable:$true] %s1574
      %1580 = dma.vmem_to_hbm [thread:$0]  %s1575, 256, %s13, [#allocation3], 128, 128, 8
    $region57: #{tpu_custom_call.1} parent=1 // pred_fallthru
      _
    // Predicated region
    $region58: #{tpu_custom_call.1} parent=1 // pred_check
      _
    $region59: #{tpu_custom_call.1} parent=1 // pred_check_branch
      %1582 = sbr.rel (0) target = $region61
    $region60: #{tpu_custom_call.1} parent=1 // pred_region
      %1583 = dma.done [#allocation3], 256
    $region61: #{tpu_custom_call.1} parent=1 // pred_fallthru
      _
    %1584 = vsyncpa [#allocation3], 1

</llo_original>
